<compile_context>
chip_gen: v7x
topology: tpu7x:2x2x1
jax: 0.10.0
libtpu: 0.0.40
codegen_flags: <defaults>
</compile_context>

<pallas_src>
import functools
import math

import jax
import jax.numpy as jnp
from jax.experimental import pallas as pl
from jax.experimental.pallas import tpu as pltpu

# ------------------------- model config (small, synthetic) -------------------------
VOCAB = 100
TYPE_VOCAB = 2
MAX_POS = 16
HIDDEN = 32
NUM_HEADS = 2
HEAD_DIM = HIDDEN // NUM_HEADS
INTERMEDIATE = 64
NUM_LAYERS = 2
NUM_CLASSES = 3
LN_EPS = 1e-12

LANES = 128

# Stacked embedding table row offsets: [word | position | token-type], zero-padded to 128.
POS_OFF = VOCAB                     # 100
TYPE_OFF = VOCAB + MAX_POS          # 116
EMB_ROWS = LANES                    # 128 (>= 118 used rows)

# w_big slab entries: [emb_table^T, layer_0 .. layer_{L-1}, pooler, classifier]
W_EMB = 0
W_LAYER0 = 1
W_POOL = 1 + NUM_LAYERS
W_CLS = 2 + NUM_LAYERS

# vec slab rows (each padded to 128 lanes, f32)
R_EMB_G, R_EMB_B = 0, 1
ROWS_PER_LAYER = 8                  # bqkv, bo, ln1_g, ln1_b, bi, bf, ln2_g, ln2_b
R_LAYER0 = 2
R_POOL_B = R_LAYER0 + NUM_LAYERS * ROWS_PER_LAYER
R_CLS_B = R_POOL_B + 1
VEC_ROWS = R_CLS_B + 1

_VMEM = pl.BlockSpec(memory_space=pltpu.MemorySpace.VMEM)


# ----------------------------------- fused kernel ----------------------------------
def _layernorm(x, g, b):
    mean = jnp.mean(x, axis=-1, keepdims=True)
    var = jnp.mean((x - mean) ** 2, axis=-1, keepdims=True)
    return (x - mean) * jax.lax.rsqrt(var + LN_EPS) * g + b


def _bert_fused_kernel(ids_ref, wbig_ref, wffn_ref, vec_ref, logits_ref, *, batch, seq):
    f32, bf16 = jnp.float32, jnp.bfloat16
    B, S, H, DH = batch, seq, HIDDEN, HEAD_DIM

    vec = vec_ref[...]                                           # (VEC_ROWS, 128) f32

    def vrow(r, w):
        return vec[r:r + 1, 0:w]                                 # (1, w) f32

    ids = ids_ref[...]                                           # (4, B, S) int32
    word_id = ids[0][:, :, None]                                 # (B, S, 1)
    type_id = ids[1][:, :, None]
    pos_id = ids[2][:, :, None]
    mask = ids[3].astype(f32)                                    # (B, S)

    # --- fused embeddings: word+pos+type gathers == ONE one-hot matmul against the
    #     stacked table (disjoint row ranges -> the matmul performs the sum). ---
    col = jax.lax.broadcasted_iota(jnp.int32, (B, S, EMB_ROWS), 2)
    onehot = ((col == word_id)
              | (col == POS_OFF + pos_id)
              | (col == TYPE_OFF + type_id)).astype(bf16)        # (B, S, 128)
    emb = jnp.einsum('bsv,hv->bsh', onehot, wbig_ref[W_EMB],
                     preferred_element_type=f32)                 # (B, S, H)
    h = _layernorm(emb, vrow(R_EMB_G, H), vrow(R_EMB_B, H))

    # Additive attention-mask bias, built once: 0 for real tokens, -1e9 for pad.
    bias = ((1.0 - mask) * (-1.0e9))[:, None, :]                 # (B, 1, S)

    for l in range(NUM_LAYERS):
        wl = wbig_ref[W_LAYER0 + l]                              # (H, 128) bf16
        base = R_LAYER0 + l * ROWS_PER_LAYER

        # Fused QKV projection (single MXU pass; 1/sqrt(dh) pre-folded into Q cols).
        qkv = jnp.einsum('bsh,hk->bsk', h.astype(bf16), wl[:, 0:3 * H],
                         preferred_element_type=f32) + vrow(base + 0, 3 * H)
        qkv = qkv.astype(bf16)                                   # (B, S, 3H)
        wo = wl[:, 3 * H:4 * H]                                  # (H, H) bf16

        # Attention batched over B; heads split once per layer (2-iteration loop).
        attn = None
        for hh in range(NUM_HEADS):
            c0 = hh * DH
            q = qkv[:, :, c0:c0 + DH]                            # (B, S, dh)
            k = qkv[:, :, H + c0:H + c0 + DH]
            v = qkv[:, :, 2 * H + c0:2 * H + c0 + DH]
            s = jnp.einsum('bqd,bkd->bqk', q, k,
                           preferred_element_type=f32) + bias    # (B, S, S)
            s = s - jnp.max(s, axis=-1, keepdims=True)
            p = jnp.exp(s)
            p = p * pl.reciprocal(jnp.sum(p, axis=-1, keepdims=True), approx=True)
            ctx = jnp.einsum('bqk,bkd->bqd', p.astype(bf16), v,
                             preferred_element_type=f32)         # (B, S, dh)
            # head-merge folded into row-slices of the output projection
            part = jnp.einsum('bqd,dh->bqh', ctx.astype(bf16), wo[c0:c0 + DH, :],
                              preferred_element_type=f32)        # (B, S, H)
            attn = part if attn is None else attn + part
        attn = attn + vrow(base + 1, H)

        # residual + LayerNorm (fused epilogue)
        h = _layernorm(h + attn, vrow(base + 2, H), vrow(base + 3, H))

        # FFN with fused GELU epilogue.
        wff = wffn_ref[l]                                        # (2H, I) bf16 = [wi ; wf^T]
        ff = jnp.einsum('bsh,hi->bsi', h.astype(bf16), wff[0:H, :],
                        preferred_element_type=f32) + vrow(base + 4, INTERMEDIATE)
        # TODO(synk): HF BERT default is erf-GELU; tanh-approx is numerically very close.
        ff = jax.nn.gelu(ff, approximate=True)
        ff = jnp.einsum('bsi,hi->bsh', ff.astype(bf16), wff[H:2 * H, :],
                        preferred_element_type=f32) + vrow(base + 5, H)
        h = _layernorm(h + ff, vrow(base + 6, H), vrow(base + 7, H))

    # Pooler (CLS -> dense -> tanh), dropout (identity at eval), classifier — all batch
    # rows at once; single lane-dense (B, 128) store (sliced to NUM_CLASSES outside).
    cls_tok = h[:, 0:1, :]                                       # (B, 1, H)
    pooled = jnp.tanh(
        jnp.einsum('bsh,hk->bsk', cls_tok.astype(bf16), wbig_ref[W_POOL][:, 0:H],
                   preferred_element_type=f32) + vrow(R_POOL_B, H))        # (B, 1, H)
    logits = jnp.einsum('bsh,hk->bsk', pooled.astype(bf16), wbig_ref[W_CLS],
                        preferred_element_type=f32) + vec[R_CLS_B:R_CLS_B + 1, :]
    logits_ref[...] = logits.reshape(B, LANES)


# ------------------------------ parameter construction -----------------------------
def _dense(key, fan_in, fan_out):
    w = 0.02 * jax.random.normal(key, (fan_in, fan_out), jnp.float32)
    b = jnp.zeros((1, fan_out), jnp.float32)
    return w, b


def _pad_row(v):
    return jnp.pad(v, ((0, 0), (0, LANES - v.shape[1])))        # (1, W) -> (1, 128)


def init_params(key):
    # TODO(synk): BertModel.from_pretrained weight loading is out of scope; weights
    #             are synthesized here with the same shapes/structure.
    keys = jax.random.split(key, 8 + NUM_LAYERS)
    word_emb = 0.02 * jax.random.normal(keys[0], (VOCAB, HIDDEN), jnp.float32)
    pos_emb = 0.02 * jax.random.normal(keys[1], (MAX_POS, HIDDEN), jnp.float32)
    type_emb = 0.02 * jax.random.normal(keys[2], (TYPE_VOCAB, HIDDEN), jnp.float32)

    scale = 1.0 / math.sqrt(HEAD_DIM)

    # --- stacked embedding table (word | pos | type), zero-padded to 128 rows, stored
    #     transposed so it shares the (HIDDEN, 128) slab layout. ---
    table = jnp.zeros((EMB_ROWS, HIDDEN), jnp.float32)
    table = table.at[0:VOCAB].set(word_emb)
    table = table.at[POS_OFF:POS_OFF + MAX_POS].set(pos_emb)
    table = table.at[TYPE_OFF:TYPE_OFF + TYPE_VOCAB].set(type_emb)
    w_big = [table.T]                                             # (H, 128)

    w_ffn = []
    vec_rows = [_pad_row(jnp.ones((1, HIDDEN), jnp.float32)),     # emb LN gamma
                _pad_row(jnp.zeros((1, HIDDEN), jnp.float32))]    # emb LN beta

    for l in range(NUM_LAYERS):
        lk = jax.random.split(keys[3 + l], 6)
        wq, bq = _dense(lk[0], HIDDEN, HIDDEN)
        wk, bk = _dense(lk[1], HIDDEN, HIDDEN)
        wv, bv = _dense(lk[2], HIDDEN, HIDDEN)
        wo, bo = _dense(lk[3], HIDDEN, HIDDEN)
        wi, bi = _dense(lk[4], HIDDEN, INTERMEDIATE)
        wf, bf = _dense(lk[5], INTERMEDIATE, HIDDEN)
        # fold 1/sqrt(head_dim) into Q; fuse Q|K|V|O into one (H, 128) slab entry
        w_big.append(jnp.concatenate([wq * scale, wk, wv, wo], axis=1))     # (H, 128)
        # FFN slab: [wi ; wf^T] -> (2H, INTERMEDIATE)
        w_ffn.append(jnp.concatenate([wi, wf.T], axis=0))
        vec_rows += [
            _pad_row(jnp.concatenate([bq * scale, bk, bv], axis=1)),        # bqkv (1, 96)
            _pad_row(bo),
            _pad_row(jnp.ones((1, HIDDEN), jnp.float32)),                   # ln1_g
            _pad_row(jnp.zeros((1, HIDDEN), jnp.float32)),                  # ln1_b
            _pad_row(bi),
            _pad_row(bf),
            _pad_row(jnp.ones((1, HIDDEN), jnp.float32)),                   # ln2_g
            _pad_row(jnp.zeros((1, HIDDEN), jnp.float32)),                  # ln2_b
        ]

    pool_w, pool_b = _dense(keys[3 + NUM_LAYERS], HIDDEN, HIDDEN)
    cls_w, cls_b = _dense(keys[4 + NUM_LAYERS], HIDDEN, NUM_CLASSES)
    w_big.append(jnp.pad(pool_w, ((0, 0), (0, LANES - HIDDEN))))            # pooler
    w_big.append(jnp.pad(cls_w, ((0, 0), (0, LANES - NUM_CLASSES))))        # classifier
    vec_rows += [_pad_row(pool_b), _pad_row(cls_b)]

    vec = jnp.concatenate(vec_rows, axis=0)                                 # (VEC_ROWS, 128)
    assert vec.shape == (VEC_ROWS, LANES)
    return {
        "w_big": jnp.stack(w_big).astype(jnp.bfloat16),   # (L+3, H, 128) bf16
        "w_ffn": jnp.stack(w_ffn).astype(jnp.bfloat16),   # (L, 2H, I)    bf16
        "vec": vec.astype(jnp.float32),                   # (VEC_ROWS, 128) f32
    }


# --------------------------------- forward pass -------------------------------------
def bert_classifier_forward(params, input_ids, attention_mask, token_type_ids):
    B, S = input_ids.shape
    assert S <= MAX_POS

    # Pack all integer inputs into a single (4, B, S) int32 slab -> one DMA.
    pos_ids = jnp.broadcast_to(jnp.arange(S, dtype=jnp.int32)[None, :], (B, S))
    ids_packed = jnp.stack([input_ids.astype(jnp.int32),
                            token_type_ids.astype(jnp.int32),
                            pos_ids,
                            attention_mask.astype(jnp.int32)], axis=0)

    kernel = functools.partial(_bert_fused_kernel, batch=B, seq=S)
    logits_padded = pl.pallas_call(
        kernel,
        out_shape=jax.ShapeDtypeStruct((B, LANES), jnp.float32),
        in_specs=[_VMEM] * 4,
        out_specs=_VMEM,
    )(ids_packed, params["w_big"], params["w_ffn"], params["vec"])
    return logits_padded[:, :NUM_CLASSES]


# ------------------------------------- main ------------------------------------------
if __name__ == "__main__":
    B, S = 2, 8
    key = jax.random.PRNGKey(0)
    pkey, ikey = jax.random.split(key)

    params = init_params(pkey)

    input_ids = jax.random.randint(ikey, (B, S), 0, VOCAB, dtype=jnp.int32)
    attention_mask = jnp.ones((B, S), jnp.int32).at[1, S - 2:].set(0)   # pad last 2 of batch 1
    token_type_ids = jnp.concatenate(
        [jnp.zeros((B, S // 2), jnp.int32), jnp.ones((B, S // 2), jnp.int32)], axis=1)

    fwd = jax.jit(bert_classifier_forward)
    logits = fwd(params, input_ids, attention_mask, token_type_ids)
    jax.block_until_ready(logits)

    assert logits.shape == (B, NUM_CLASSES) and logits.dtype == jnp.float32
    print("KERNEL_OK")
</pallas_src>

<mosaic_0001>
module attributes {stable_mosaic.version = 11 : i64} {
  func.func @_bert_fused_kernel(%arg0: memref<4x2x8xi32, #tpu.memory_space<vmem>>, %arg1: memref<5x32x128xbf16, #tpu.memory_space<vmem>>, %arg2: memref<2x64x64xbf16, #tpu.memory_space<vmem>>, %arg3: memref<20x128xf32, #tpu.memory_space<vmem>>, %arg4: memref<2x128xf32, #tpu.memory_space<vmem>>) attributes {dimension_semantics = [], scalar_prefetch = 0 : i64, scratch_operands = 0 : i64, tpu.core_type = #tpu.core_type<tc>} {
    %c0 = arith.constant 0 : index
    %c0_0 = arith.constant 0 : index
    %0 = vector.load %arg3[%c0, %c0_0] : memref<20x128xf32, #tpu.memory_space<vmem>>, vector<20x128xf32>
    %c0_1 = arith.constant 0 : index
    %c0_2 = arith.constant 0 : index
    %c0_3 = arith.constant 0 : index
    %1 = vector.load %arg0[%c0_1, %c0_2, %c0_3] : memref<4x2x8xi32, #tpu.memory_space<vmem>>, vector<4x2x8xi32>
    %2 = vector.extract_strided_slice %1 {offsets = [0, 0, 0], sizes = [1, 2, 8], strides = [1, 1, 1]} : vector<4x2x8xi32> to vector<1x2x8xi32>
    %3 = vector.shape_cast %2 : vector<1x2x8xi32> to vector<2x8xi32>
    %4 = vector.shape_cast %3 : vector<2x8xi32> to vector<2x8x1xi32>
    %5 = vector.extract_strided_slice %1 {offsets = [1, 0, 0], sizes = [1, 2, 8], strides = [1, 1, 1]} : vector<4x2x8xi32> to vector<1x2x8xi32>
    %6 = vector.shape_cast %5 : vector<1x2x8xi32> to vector<2x8xi32>
    %7 = vector.shape_cast %6 : vector<2x8xi32> to vector<2x8x1xi32>
    %8 = vector.extract_strided_slice %1 {offsets = [2, 0, 0], sizes = [1, 2, 8], strides = [1, 1, 1]} : vector<4x2x8xi32> to vector<1x2x8xi32>
    %9 = vector.shape_cast %8 : vector<1x2x8xi32> to vector<2x8xi32>
    %10 = vector.shape_cast %9 : vector<2x8xi32> to vector<2x8x1xi32>
    %11 = vector.extract_strided_slice %1 {offsets = [3, 0, 0], sizes = [1, 2, 8], strides = [1, 1, 1]} : vector<4x2x8xi32> to vector<1x2x8xi32>
    %12 = vector.shape_cast %11 : vector<1x2x8xi32> to vector<2x8xi32>
    %13 = arith.sitofp %12 : vector<2x8xi32> to vector<2x8xf32>
    %14 = tpu.iota {dimensions = array<i32: 2>} : vector<2x8x128xi32>
    %15 = vector.broadcast %4 : vector<2x8x1xi32> to vector<2x8x128xi32>
    %16 = arith.cmpi eq, %14, %15 : vector<2x8x128xi32>
    %c100_i32 = arith.constant 100 : i32
    %17 = vector.broadcast %c100_i32 : i32 to vector<2x8x1xi32>
    %18 = arith.addi %17, %10 : vector<2x8x1xi32>
    %19 = vector.broadcast %18 : vector<2x8x1xi32> to vector<2x8x128xi32>
    %20 = arith.cmpi eq, %14, %19 : vector<2x8x128xi32>
    %21 = arith.ori %16, %20 : vector<2x8x128xi1>
    %c116_i32 = arith.constant 116 : i32
    %22 = vector.broadcast %c116_i32 : i32 to vector<2x8x1xi32>
    %23 = arith.addi %22, %7 : vector<2x8x1xi32>
    %24 = vector.broadcast %23 : vector<2x8x1xi32> to vector<2x8x128xi32>
    %25 = arith.cmpi eq, %14, %24 : vector<2x8x128xi32>
    %26 = arith.ori %21, %25 : vector<2x8x128xi1>
    %27 = arith.extui %26 : vector<2x8x128xi1> to vector<2x8x128xi32>
    %28 = arith.sitofp %27 : vector<2x8x128xi32> to vector<2x8x128xf32>
    %29 = arith.truncf %28 : vector<2x8x128xf32> to vector<2x8x128xbf16>
    %c0_4 = arith.constant 0 : index
    %c0_5 = arith.constant 0 : index
    %c0_6 = arith.constant 0 : index
    %30 = vector.load %arg1[%c0_4, %c0_5, %c0_6] : memref<5x32x128xbf16, #tpu.memory_space<vmem>>, vector<1x32x128xbf16>
    %31 = vector.shape_cast %30 : vector<1x32x128xbf16> to vector<32x128xbf16>
    "tpu.trace_start"() <{level = 10 : i32, message = "bsv,hv->bsh"}> : () -> ()
    %cst = arith.constant dense<0.000000e+00> : vector<2x8x32xf32>
    %32 = tpu.matmul %29, %31, %cst {dimension_numbers = #tpu.dot_dimension_numbers<[2], [1], [0, 1], [0], [0, 0, 0, 1, 1, 0], [], []>} : vector<2x8x128xbf16>, vector<32x128xbf16>, vector<2x8x32xf32> -> vector<2x8x32xf32>
    "tpu.trace_stop"() : () -> ()
    %33 = vector.extract_strided_slice %0 {offsets = [0, 0], sizes = [1, 32], strides = [1, 1]} : vector<20x128xf32> to vector<1x32xf32>
    %34 = vector.extract_strided_slice %0 {offsets = [1, 0], sizes = [1, 32], strides = [1, 1]} : vector<20x128xf32> to vector<1x32xf32>
    %cst_7 = arith.constant dense<0.000000e+00> : vector<2x8xf32>
    %35 = vector.multi_reduction <add>, %32, %cst_7 [2] : vector<2x8x32xf32> to vector<2x8xf32>
    %36 = vector.shape_cast %35 : vector<2x8xf32> to vector<2x8x1xf32>
    %cst_8 = arith.constant 3.200000e+01 : f32
    %37 = vector.broadcast %cst_8 : f32 to vector<2x8x1xf32>
    %38 = arith.divf %36, %37 : vector<2x8x1xf32>
    %39 = vector.broadcast %38 : vector<2x8x1xf32> to vector<2x8x32xf32>
    %40 = arith.subf %32, %39 : vector<2x8x32xf32>
    %41 = arith.mulf %40, %40 : vector<2x8x32xf32>
    %cst_9 = arith.constant dense<0.000000e+00> : vector<2x8xf32>
    %42 = vector.multi_reduction <add>, %41, %cst_9 [2] : vector<2x8x32xf32> to vector<2x8xf32>
    %43 = vector.shape_cast %42 : vector<2x8xf32> to vector<2x8x1xf32>
    %cst_10 = arith.constant 3.200000e+01 : f32
    %44 = vector.broadcast %cst_10 : f32 to vector<2x8x1xf32>
    %45 = arith.divf %43, %44 : vector<2x8x1xf32>
    %46 = vector.broadcast %38 : vector<2x8x1xf32> to vector<2x8x32xf32>
    %47 = arith.subf %32, %46 : vector<2x8x32xf32>
    %cst_11 = arith.constant 9.99999996E-13 : f32
    %48 = vector.broadcast %cst_11 : f32 to vector<2x8x1xf32>
    %49 = arith.addf %45, %48 : vector<2x8x1xf32>
    %50 = math.rsqrt %49 : vector<2x8x1xf32>
    %51 = vector.broadcast %50 : vector<2x8x1xf32> to vector<2x8x32xf32>
    %52 = arith.mulf %47, %51 : vector<2x8x32xf32>
    %53 = vector.shape_cast %33 : vector<1x32xf32> to vector<1x1x32xf32>
    %54 = vector.broadcast %53 : vector<1x1x32xf32> to vector<2x8x32xf32>
    %55 = arith.mulf %52, %54 : vector<2x8x32xf32>
    %56 = vector.shape_cast %34 : vector<1x32xf32> to vector<1x1x32xf32>
    %57 = vector.broadcast %56 : vector<1x1x32xf32> to vector<2x8x32xf32>
    %58 = arith.addf %55, %57 : vector<2x8x32xf32>
    %cst_12 = arith.constant 1.000000e+00 : f32
    %59 = vector.broadcast %cst_12 : f32 to vector<2x8xf32>
    %60 = arith.subf %59, %13 : vector<2x8xf32>
    %cst_13 = arith.constant -1.000000e+09 : f32
    %61 = vector.broadcast %cst_13 : f32 to vector<2x8xf32>
    %62 = arith.mulf %60, %61 : vector<2x8xf32>
    %63 = vector.shape_cast %62 : vector<2x8xf32> to vector<2x1x8xf32>
    %c1 = arith.constant 1 : index
    %c0_14 = arith.constant 0 : index
    %c0_15 = arith.constant 0 : index
    %64 = vector.load %arg1[%c1, %c0_14, %c0_15] : memref<5x32x128xbf16, #tpu.memory_space<vmem>>, vector<1x32x128xbf16>
    %65 = vector.shape_cast %64 : vector<1x32x128xbf16> to vector<32x128xbf16>
    %66 = arith.truncf %58 : vector<2x8x32xf32> to vector<2x8x32xbf16>
    %67 = vector.extract_strided_slice %65 {offsets = [0, 0], sizes = [32, 96], strides = [1, 1]} : vector<32x128xbf16> to vector<32x96xbf16>
    "tpu.trace_start"() <{level = 10 : i32, message = "bsh,hk->bsk"}> : () -> ()
    %cst_16 = arith.constant dense<0.000000e+00> : vector<2x8x96xf32>
    %68 = tpu.matmul %66, %67, %cst_16 {dimension_numbers = #tpu.dot_dimension_numbers<[2], [0], [0, 1], [1], [0, 0, 0, 1, 1, 1], [], []>} : vector<2x8x32xbf16>, vector<32x96xbf16>, vector<2x8x96xf32> -> vector<2x8x96xf32>
    "tpu.trace_stop"() : () -> ()
    %69 = vector.extract_strided_slice %0 {offsets = [2, 0], sizes = [1, 96], strides = [1, 1]} : vector<20x128xf32> to vector<1x96xf32>
    %70 = vector.shape_cast %69 : vector<1x96xf32> to vector<1x1x96xf32>
    %71 = vector.broadcast %70 : vector<1x1x96xf32> to vector<2x8x96xf32>
    %72 = arith.addf %68, %71 : vector<2x8x96xf32>
    %73 = arith.truncf %72 : vector<2x8x96xf32> to vector<2x8x96xbf16>
    %74 = vector.extract_strided_slice %65 {offsets = [0, 96], sizes = [32, 32], strides = [1, 1]} : vector<32x128xbf16> to vector<32x32xbf16>
    %75 = vector.extract_strided_slice %73 {offsets = [0, 0, 0], sizes = [2, 8, 16], strides = [1, 1, 1]} : vector<2x8x96xbf16> to vector<2x8x16xbf16>
    %76 = vector.extract_strided_slice %73 {offsets = [0, 0, 32], sizes = [2, 8, 16], strides = [1, 1, 1]} : vector<2x8x96xbf16> to vector<2x8x16xbf16>
    %77 = vector.extract_strided_slice %73 {offsets = [0, 0, 64], sizes = [2, 8, 16], strides = [1, 1, 1]} : vector<2x8x96xbf16> to vector<2x8x16xbf16>
    "tpu.trace_start"() <{level = 10 : i32, message = "bqd,bkd->bqk"}> : () -> ()
    %cst_17 = arith.constant dense<0.000000e+00> : vector<2x8x8xf32>
    %78 = tpu.matmul %75, %76, %cst_17 {dimension_numbers = #tpu.dot_dimension_numbers<[2], [2], [1], [1], [0, 0, 0, 1, 1, 1], [0], [0]>} : vector<2x8x16xbf16>, vector<2x8x16xbf16>, vector<2x8x8xf32> -> vector<2x8x8xf32>
    "tpu.trace_stop"() : () -> ()
    %79 = vector.broadcast %63 : vector<2x1x8xf32> to vector<2x8x8xf32>
    %80 = arith.addf %78, %79 : vector<2x8x8xf32>
    %cst_18 = arith.constant dense<0xFF800000> : vector<2x8xf32>
    %81 = vector.multi_reduction <maximumf>, %80, %cst_18 [2] : vector<2x8x8xf32> to vector<2x8xf32>
    %82 = vector.shape_cast %81 : vector<2x8xf32> to vector<2x8x1xf32>
    %83 = vector.broadcast %82 : vector<2x8x1xf32> to vector<2x8x8xf32>
    %84 = arith.subf %80, %83 : vector<2x8x8xf32>
    %85 = math.exp %84 : vector<2x8x8xf32>
    %cst_19 = arith.constant dense<0.000000e+00> : vector<2x8xf32>
    %86 = vector.multi_reduction <add>, %85, %cst_19 [2] : vector<2x8x8xf32> to vector<2x8xf32>
    %87 = vector.shape_cast %86 : vector<2x8xf32> to vector<2x8x1xf32>
    %88 = tpu.reciprocal %87 {approx = true} : vector<2x8x1xf32> -> vector<2x8x1xf32>
    %89 = vector.broadcast %88 : vector<2x8x1xf32> to vector<2x8x8xf32>
    %90 = arith.mulf %85, %89 : vector<2x8x8xf32>
    %91 = arith.truncf %90 : vector<2x8x8xf32> to vector<2x8x8xbf16>
    "tpu.trace_start"() <{level = 10 : i32, message = "bqk,bkd->bqd"}> : () -> ()
    %cst_20 = arith.constant dense<0.000000e+00> : vector<2x8x16xf32>
    %92 = tpu.matmul %91, %77, %cst_20 {dimension_numbers = #tpu.dot_dimension_numbers<[2], [1], [1], [2], [0, 0, 0, 1, 1, 2], [0], [0]>} : vector<2x8x8xbf16>, vector<2x8x16xbf16>, vector<2x8x16xf32> -> vector<2x8x16xf32>
    "tpu.trace_stop"() : () -> ()
    %93 = arith.truncf %92 : vector<2x8x16xf32> to vector<2x8x16xbf16>
    %94 = vector.extract_strided_slice %74 {offsets = [0, 0], sizes = [16, 32], strides = [1, 1]} : vector<32x32xbf16> to vector<16x32xbf16>
    "tpu.trace_start"() <{level = 10 : i32, message = "bqd,dh->bqh"}> : () -> ()
    %cst_21 = arith.constant dense<0.000000e+00> : vector<2x8x32xf32>
    %95 = tpu.matmul %93, %94, %cst_21 {dimension_numbers = #tpu.dot_dimension_numbers<[2], [0], [0, 1], [1], [0, 0, 0, 1, 1, 1], [], []>} : vector<2x8x16xbf16>, vector<16x32xbf16>, vector<2x8x32xf32> -> vector<2x8x32xf32>
    "tpu.trace_stop"() : () -> ()
    %96 = vector.extract_strided_slice %73 {offsets = [0, 0, 16], sizes = [2, 8, 16], strides = [1, 1, 1]} : vector<2x8x96xbf16> to vector<2x8x16xbf16>
    %97 = vector.extract_strided_slice %73 {offsets = [0, 0, 48], sizes = [2, 8, 16], strides = [1, 1, 1]} : vector<2x8x96xbf16> to vector<2x8x16xbf16>
    %98 = vector.extract_strided_slice %73 {offsets = [0, 0, 80], sizes = [2, 8, 16], strides = [1, 1, 1]} : vector<2x8x96xbf16> to vector<2x8x16xbf16>
    "tpu.trace_start"() <{level = 10 : i32, message = "bqd,bkd->bqk"}> : () -> ()
    %cst_22 = arith.constant dense<0.000000e+00> : vector<2x8x8xf32>
    %99 = tpu.matmul %96, %97, %cst_22 {dimension_numbers = #tpu.dot_dimension_numbers<[2], [2], [1], [1], [0, 0, 0, 1, 1, 1], [0], [0]>} : vector<2x8x16xbf16>, vector<2x8x16xbf16>, vector<2x8x8xf32> -> vector<2x8x8xf32>
    "tpu.trace_stop"() : () -> ()
    %100 = vector.broadcast %63 : vector<2x1x8xf32> to vector<2x8x8xf32>
    %101 = arith.addf %99, %100 : vector<2x8x8xf32>
    %cst_23 = arith.constant dense<0xFF800000> : vector<2x8xf32>
    %102 = vector.multi_reduction <maximumf>, %101, %cst_23 [2] : vector<2x8x8xf32> to vector<2x8xf32>
    %103 = vector.shape_cast %102 : vector<2x8xf32> to vector<2x8x1xf32>
    %104 = vector.broadcast %103 : vector<2x8x1xf32> to vector<2x8x8xf32>
    %105 = arith.subf %101, %104 : vector<2x8x8xf32>
    %106 = math.exp %105 : vector<2x8x8xf32>
    %cst_24 = arith.constant dense<0.000000e+00> : vector<2x8xf32>
    %107 = vector.multi_reduction <add>, %106, %cst_24 [2] : vector<2x8x8xf32> to vector<2x8xf32>
    %108 = vector.shape_cast %107 : vector<2x8xf32> to vector<2x8x1xf32>
    %109 = tpu.reciprocal %108 {approx = true} : vector<2x8x1xf32> -> vector<2x8x1xf32>
    %110 = vector.broadcast %109 : vector<2x8x1xf32> to vector<2x8x8xf32>
    %111 = arith.mulf %106, %110 : vector<2x8x8xf32>
    %112 = arith.truncf %111 : vector<2x8x8xf32> to vector<2x8x8xbf16>
    "tpu.trace_start"() <{level = 10 : i32, message = "bqk,bkd->bqd"}> : () -> ()
    %cst_25 = arith.constant dense<0.000000e+00> : vector<2x8x16xf32>
    %113 = tpu.matmul %112, %98, %cst_25 {dimension_numbers = #tpu.dot_dimension_numbers<[2], [1], [1], [2], [0, 0, 0, 1, 1, 2], [0], [0]>} : vector<2x8x8xbf16>, vector<2x8x16xbf16>, vector<2x8x16xf32> -> vector<2x8x16xf32>
    "tpu.trace_stop"() : () -> ()
    %114 = arith.truncf %113 : vector<2x8x16xf32> to vector<2x8x16xbf16>
    %115 = vector.extract_strided_slice %74 {offsets = [16, 0], sizes = [16, 32], strides = [1, 1]} : vector<32x32xbf16> to vector<16x32xbf16>
    "tpu.trace_start"() <{level = 10 : i32, message = "bqd,dh->bqh"}> : () -> ()
    %cst_26 = arith.constant dense<0.000000e+00> : vector<2x8x32xf32>
    %116 = tpu.matmul %114, %115, %cst_26 {dimension_numbers = #tpu.dot_dimension_numbers<[2], [0], [0, 1], [1], [0, 0, 0, 1, 1, 1], [], []>} : vector<2x8x16xbf16>, vector<16x32xbf16>, vector<2x8x32xf32> -> vector<2x8x32xf32>
    "tpu.trace_stop"() : () -> ()
    %117 = arith.addf %95, %116 : vector<2x8x32xf32>
    %118 = vector.extract_strided_slice %0 {offsets = [3, 0], sizes = [1, 32], strides = [1, 1]} : vector<20x128xf32> to vector<1x32xf32>
    %119 = vector.shape_cast %118 : vector<1x32xf32> to vector<1x1x32xf32>
    %120 = vector.broadcast %119 : vector<1x1x32xf32> to vector<2x8x32xf32>
    %121 = arith.addf %117, %120 : vector<2x8x32xf32>
    %122 = arith.addf %58, %121 : vector<2x8x32xf32>
    %123 = vector.extract_strided_slice %0 {offsets = [4, 0], sizes = [1, 32], strides = [1, 1]} : vector<20x128xf32> to vector<1x32xf32>
    %124 = vector.extract_strided_slice %0 {offsets = [5, 0], sizes = [1, 32], strides = [1, 1]} : vector<20x128xf32> to vector<1x32xf32>
    %cst_27 = arith.constant dense<0.000000e+00> : vector<2x8xf32>
    %125 = vector.multi_reduction <add>, %122, %cst_27 [2] : vector<2x8x32xf32> to vector<2x8xf32>
    %126 = vector.shape_cast %125 : vector<2x8xf32> to vector<2x8x1xf32>
    %cst_28 = arith.constant 3.200000e+01 : f32
    %127 = vector.broadcast %cst_28 : f32 to vector<2x8x1xf32>
    %128 = arith.divf %126, %127 : vector<2x8x1xf32>
    %129 = vector.broadcast %128 : vector<2x8x1xf32> to vector<2x8x32xf32>
    %130 = arith.subf %122, %129 : vector<2x8x32xf32>
    %131 = arith.mulf %130, %130 : vector<2x8x32xf32>
    %cst_29 = arith.constant dense<0.000000e+00> : vector<2x8xf32>
    %132 = vector.multi_reduction <add>, %131, %cst_29 [2] : vector<2x8x32xf32> to vector<2x8xf32>
    %133 = vector.shape_cast %132 : vector<2x8xf32> to vector<2x8x1xf32>
    %cst_30 = arith.constant 3.200000e+01 : f32
    %134 = vector.broadcast %cst_30 : f32 to vector<2x8x1xf32>
    %135 = arith.divf %133, %134 : vector<2x8x1xf32>
    %136 = vector.broadcast %128 : vector<2x8x1xf32> to vector<2x8x32xf32>
    %137 = arith.subf %122, %136 : vector<2x8x32xf32>
    %cst_31 = arith.constant 9.99999996E-13 : f32
    %138 = vector.broadcast %cst_31 : f32 to vector<2x8x1xf32>
    %139 = arith.addf %135, %138 : vector<2x8x1xf32>
    %140 = math.rsqrt %139 : vector<2x8x1xf32>
    %141 = vector.broadcast %140 : vector<2x8x1xf32> to vector<2x8x32xf32>
    %142 = arith.mulf %137, %141 : vector<2x8x32xf32>
    %143 = vector.shape_cast %123 : vector<1x32xf32> to vector<1x1x32xf32>
    %144 = vector.broadcast %143 : vector<1x1x32xf32> to vector<2x8x32xf32>
    %145 = arith.mulf %142, %144 : vector<2x8x32xf32>
    %146 = vector.shape_cast %124 : vector<1x32xf32> to vector<1x1x32xf32>
    %147 = vector.broadcast %146 : vector<1x1x32xf32> to vector<2x8x32xf32>
    %148 = arith.addf %145, %147 : vector<2x8x32xf32>
    %c0_32 = arith.constant 0 : index
    %c0_33 = arith.constant 0 : index
    %c0_34 = arith.constant 0 : index
    %149 = vector.load %arg2[%c0_32, %c0_33, %c0_34] : memref<2x64x64xbf16, #tpu.memory_space<vmem>>, vector<1x64x64xbf16>
    %150 = vector.shape_cast %149 : vector<1x64x64xbf16> to vector<64x64xbf16>
    %151 = arith.truncf %148 : vector<2x8x32xf32> to vector<2x8x32xbf16>
    %152 = vector.extract_strided_slice %150 {offsets = [0, 0], sizes = [32, 64], strides = [1, 1]} : vector<64x64xbf16> to vector<32x64xbf16>
    "tpu.trace_start"() <{level = 10 : i32, message = "bsh,hi->bsi"}> : () -> ()
    %cst_35 = arith.constant dense<0.000000e+00> : vector<2x8x64xf32>
    %153 = tpu.matmul %151, %152, %cst_35 {dimension_numbers = #tpu.dot_dimension_numbers<[2], [0], [0, 1], [1], [0, 0, 0, 1, 1, 1], [], []>} : vector<2x8x32xbf16>, vector<32x64xbf16>, vector<2x8x64xf32> -> vector<2x8x64xf32>
    "tpu.trace_stop"() : () -> ()
    %154 = vector.extract_strided_slice %0 {offsets = [6, 0], sizes = [1, 64], strides = [1, 1]} : vector<20x128xf32> to vector<1x64xf32>
    %155 = vector.shape_cast %154 : vector<1x64xf32> to vector<1x1x64xf32>
    %156 = vector.broadcast %155 : vector<1x1x64xf32> to vector<2x8x64xf32>
    %157 = arith.addf %153, %156 : vector<2x8x64xf32>
    %158 = arith.mulf %157, %157 : vector<2x8x64xf32>
    %159 = arith.mulf %157, %158 : vector<2x8x64xf32>
    %cst_36 = arith.constant 4.471500e-02 : f32
    %160 = vector.broadcast %cst_36 : f32 to vector<2x8x64xf32>
    %161 = arith.mulf %160, %159 : vector<2x8x64xf32>
    %162 = arith.addf %157, %161 : vector<2x8x64xf32>
    %cst_37 = arith.constant 0.797884583 : f32
    %163 = vector.broadcast %cst_37 : f32 to vector<2x8x64xf32>
    %164 = arith.mulf %163, %162 : vector<2x8x64xf32>
    %165 = math.tanh %164 : vector<2x8x64xf32>
    %cst_38 = arith.constant 1.000000e+00 : f32
    %166 = vector.broadcast %cst_38 : f32 to vector<2x8x64xf32>
    %167 = arith.addf %166, %165 : vector<2x8x64xf32>
    %cst_39 = arith.constant 5.000000e-01 : f32
    %168 = vector.broadcast %cst_39 : f32 to vector<2x8x64xf32>
    %169 = arith.mulf %168, %167 : vector<2x8x64xf32>
    %170 = arith.mulf %157, %169 : vector<2x8x64xf32>
    %171 = arith.truncf %170 : vector<2x8x64xf32> to vector<2x8x64xbf16>
    %172 = vector.extract_strided_slice %150 {offsets = [32, 0], sizes = [32, 64], strides = [1, 1]} : vector<64x64xbf16> to vector<32x64xbf16>
    "tpu.trace_start"() <{level = 10 : i32, message = "bsi,hi->bsh"}> : () -> ()
    %cst_40 = arith.constant dense<0.000000e+00> : vector<2x8x32xf32>
    %173 = tpu.matmul %171, %172, %cst_40 {dimension_numbers = #tpu.dot_dimension_numbers<[2], [1], [0, 1], [0], [0, 0, 0, 1, 1, 0], [], []>} : vector<2x8x64xbf16>, vector<32x64xbf16>, vector<2x8x32xf32> -> vector<2x8x32xf32>
    "tpu.trace_stop"() : () -> ()
    %174 = vector.extract_strided_slice %0 {offsets = [7, 0], sizes = [1, 32], strides = [1, 1]} : vector<20x128xf32> to vector<1x32xf32>
    %175 = vector.shape_cast %174 : vector<1x32xf32> to vector<1x1x32xf32>
    %176 = vector.broadcast %175 : vector<1x1x32xf32> to vector<2x8x32xf32>
    %177 = arith.addf %173, %176 : vector<2x8x32xf32>
    %178 = arith.addf %148, %177 : vector<2x8x32xf32>
    %179 = vector.extract_strided_slice %0 {offsets = [8, 0], sizes = [1, 32], strides = [1, 1]} : vector<20x128xf32> to vector<1x32xf32>
    %180 = vector.extract_strided_slice %0 {offsets = [9, 0], sizes = [1, 32], strides = [1, 1]} : vector<20x128xf32> to vector<1x32xf32>
    %cst_41 = arith.constant dense<0.000000e+00> : vector<2x8xf32>
    %181 = vector.multi_reduction <add>, %178, %cst_41 [2] : vector<2x8x32xf32> to vector<2x8xf32>
    %182 = vector.shape_cast %181 : vector<2x8xf32> to vector<2x8x1xf32>
    %cst_42 = arith.constant 3.200000e+01 : f32
    %183 = vector.broadcast %cst_42 : f32 to vector<2x8x1xf32>
    %184 = arith.divf %182, %183 : vector<2x8x1xf32>
    %185 = vector.broadcast %184 : vector<2x8x1xf32> to vector<2x8x32xf32>
    %186 = arith.subf %178, %185 : vector<2x8x32xf32>
    %187 = arith.mulf %186, %186 : vector<2x8x32xf32>
    %cst_43 = arith.constant dense<0.000000e+00> : vector<2x8xf32>
    %188 = vector.multi_reduction <add>, %187, %cst_43 [2] : vector<2x8x32xf32> to vector<2x8xf32>
    %189 = vector.shape_cast %188 : vector<2x8xf32> to vector<2x8x1xf32>
    %cst_44 = arith.constant 3.200000e+01 : f32
    %190 = vector.broadcast %cst_44 : f32 to vector<2x8x1xf32>
    %191 = arith.divf %189, %190 : vector<2x8x1xf32>
    %192 = vector.broadcast %184 : vector<2x8x1xf32> to vector<2x8x32xf32>
    %193 = arith.subf %178, %192 : vector<2x8x32xf32>
    %cst_45 = arith.constant 9.99999996E-13 : f32
    %194 = vector.broadcast %cst_45 : f32 to vector<2x8x1xf32>
    %195 = arith.addf %191, %194 : vector<2x8x1xf32>
    %196 = math.rsqrt %195 : vector<2x8x1xf32>
    %197 = vector.broadcast %196 : vector<2x8x1xf32> to vector<2x8x32xf32>
    %198 = arith.mulf %193, %197 : vector<2x8x32xf32>
    %199 = vector.shape_cast %179 : vector<1x32xf32> to vector<1x1x32xf32>
    %200 = vector.broadcast %199 : vector<1x1x32xf32> to vector<2x8x32xf32>
    %201 = arith.mulf %198, %200 : vector<2x8x32xf32>
    %202 = vector.shape_cast %180 : vector<1x32xf32> to vector<1x1x32xf32>
    %203 = vector.broadcast %202 : vector<1x1x32xf32> to vector<2x8x32xf32>
    %204 = arith.addf %201, %203 : vector<2x8x32xf32>
    %c2 = arith.constant 2 : index
    %c0_46 = arith.constant 0 : index
    %c0_47 = arith.constant 0 : index
    %205 = vector.load %arg1[%c2, %c0_46, %c0_47] : memref<5x32x128xbf16, #tpu.memory_space<vmem>>, vector<1x32x128xbf16>
    %206 = vector.shape_cast %205 : vector<1x32x128xbf16> to vector<32x128xbf16>
    %207 = arith.truncf %204 : vector<2x8x32xf32> to vector<2x8x32xbf16>
    %208 = vector.extract_strided_slice %206 {offsets = [0, 0], sizes = [32, 96], strides = [1, 1]} : vector<32x128xbf16> to vector<32x96xbf16>
    "tpu.trace_start"() <{level = 10 : i32, message = "bsh,hk->bsk"}> : () -> ()
    %cst_48 = arith.constant dense<0.000000e+00> : vector<2x8x96xf32>
    %209 = tpu.matmul %207, %208, %cst_48 {dimension_numbers = #tpu.dot_dimension_numbers<[2], [0], [0, 1], [1], [0, 0, 0, 1, 1, 1], [], []>} : vector<2x8x32xbf16>, vector<32x96xbf16>, vector<2x8x96xf32> -> vector<2x8x96xf32>
    "tpu.trace_stop"() : () -> ()
    %210 = vector.extract_strided_slice %0 {offsets = [10, 0], sizes = [1, 96], strides = [1, 1]} : vector<20x128xf32> to vector<1x96xf32>
    %211 = vector.shape_cast %210 : vector<1x96xf32> to vector<1x1x96xf32>
    %212 = vector.broadcast %211 : vector<1x1x96xf32> to vector<2x8x96xf32>
    %213 = arith.addf %209, %212 : vector<2x8x96xf32>
    %214 = arith.truncf %213 : vector<2x8x96xf32> to vector<2x8x96xbf16>
    %215 = vector.extract_strided_slice %206 {offsets = [0, 96], sizes = [32, 32], strides = [1, 1]} : vector<32x128xbf16> to vector<32x32xbf16>
    %216 = vector.extract_strided_slice %214 {offsets = [0, 0, 0], sizes = [2, 8, 16], strides = [1, 1, 1]} : vector<2x8x96xbf16> to vector<2x8x16xbf16>
    %217 = vector.extract_strided_slice %214 {offsets = [0, 0, 32], sizes = [2, 8, 16], strides = [1, 1, 1]} : vector<2x8x96xbf16> to vector<2x8x16xbf16>
    %218 = vector.extract_strided_slice %214 {offsets = [0, 0, 64], sizes = [2, 8, 16], strides = [1, 1, 1]} : vector<2x8x96xbf16> to vector<2x8x16xbf16>
    "tpu.trace_start"() <{level = 10 : i32, message = "bqd,bkd->bqk"}> : () -> ()
    %cst_49 = arith.constant dense<0.000000e+00> : vector<2x8x8xf32>
    %219 = tpu.matmul %216, %217, %cst_49 {dimension_numbers = #tpu.dot_dimension_numbers<[2], [2], [1], [1], [0, 0, 0, 1, 1, 1], [0], [0]>} : vector<2x8x16xbf16>, vector<2x8x16xbf16>, vector<2x8x8xf32> -> vector<2x8x8xf32>
    "tpu.trace_stop"() : () -> ()
    %220 = vector.broadcast %63 : vector<2x1x8xf32> to vector<2x8x8xf32>
    %221 = arith.addf %219, %220 : vector<2x8x8xf32>
    %cst_50 = arith.constant dense<0xFF800000> : vector<2x8xf32>
    %222 = vector.multi_reduction <maximumf>, %221, %cst_50 [2] : vector<2x8x8xf32> to vector<2x8xf32>
    %223 = vector.shape_cast %222 : vector<2x8xf32> to vector<2x8x1xf32>
    %224 = vector.broadcast %223 : vector<2x8x1xf32> to vector<2x8x8xf32>
    %225 = arith.subf %221, %224 : vector<2x8x8xf32>
    %226 = math.exp %225 : vector<2x8x8xf32>
    %cst_51 = arith.constant dense<0.000000e+00> : vector<2x8xf32>
    %227 = vector.multi_reduction <add>, %226, %cst_51 [2] : vector<2x8x8xf32> to vector<2x8xf32>
    %228 = vector.shape_cast %227 : vector<2x8xf32> to vector<2x8x1xf32>
    %229 = tpu.reciprocal %228 {approx = true} : vector<2x8x1xf32> -> vector<2x8x1xf32>
    %230 = vector.broadcast %229 : vector<2x8x1xf32> to vector<2x8x8xf32>
    %231 = arith.mulf %226, %230 : vector<2x8x8xf32>
    %232 = arith.truncf %231 : vector<2x8x8xf32> to vector<2x8x8xbf16>
    "tpu.trace_start"() <{level = 10 : i32, message = "bqk,bkd->bqd"}> : () -> ()
    %cst_52 = arith.constant dense<0.000000e+00> : vector<2x8x16xf32>
    %233 = tpu.matmul %232, %218, %cst_52 {dimension_numbers = #tpu.dot_dimension_numbers<[2], [1], [1], [2], [0, 0, 0, 1, 1, 2], [0], [0]>} : vector<2x8x8xbf16>, vector<2x8x16xbf16>, vector<2x8x16xf32> -> vector<2x8x16xf32>
    "tpu.trace_stop"() : () -> ()
    %234 = arith.truncf %233 : vector<2x8x16xf32> to vector<2x8x16xbf16>
    %235 = vector.extract_strided_slice %215 {offsets = [0, 0], sizes = [16, 32], strides = [1, 1]} : vector<32x32xbf16> to vector<16x32xbf16>
    "tpu.trace_start"() <{level = 10 : i32, message = "bqd,dh->bqh"}> : () -> ()
    %cst_53 = arith.constant dense<0.000000e+00> : vector<2x8x32xf32>
    %236 = tpu.matmul %234, %235, %cst_53 {dimension_numbers = #tpu.dot_dimension_numbers<[2], [0], [0, 1], [1], [0, 0, 0, 1, 1, 1], [], []>} : vector<2x8x16xbf16>, vector<16x32xbf16>, vector<2x8x32xf32> -> vector<2x8x32xf32>
    "tpu.trace_stop"() : () -> ()
    %237 = vector.extract_strided_slice %214 {offsets = [0, 0, 16], sizes = [2, 8, 16], strides = [1, 1, 1]} : vector<2x8x96xbf16> to vector<2x8x16xbf16>
    %238 = vector.extract_strided_slice %214 {offsets = [0, 0, 48], sizes = [2, 8, 16], strides = [1, 1, 1]} : vector<2x8x96xbf16> to vector<2x8x16xbf16>
    %239 = vector.extract_strided_slice %214 {offsets = [0, 0, 80], sizes = [2, 8, 16], strides = [1, 1, 1]} : vector<2x8x96xbf16> to vector<2x8x16xbf16>
    "tpu.trace_start"() <{level = 10 : i32, message = "bqd,bkd->bqk"}> : () -> ()
    %cst_54 = arith.constant dense<0.000000e+00> : vector<2x8x8xf32>
    %240 = tpu.matmul %237, %238, %cst_54 {dimension_numbers = #tpu.dot_dimension_numbers<[2], [2], [1], [1], [0, 0, 0, 1, 1, 1], [0], [0]>} : vector<2x8x16xbf16>, vector<2x8x16xbf16>, vector<2x8x8xf32> -> vector<2x8x8xf32>
    "tpu.trace_stop"() : () -> ()
    %241 = vector.broadcast %63 : vector<2x1x8xf32> to vector<2x8x8xf32>
    %242 = arith.addf %240, %241 : vector<2x8x8xf32>
    %cst_55 = arith.constant dense<0xFF800000> : vector<2x8xf32>
    %243 = vector.multi_reduction <maximumf>, %242, %cst_55 [2] : vector<2x8x8xf32> to vector<2x8xf32>
    %244 = vector.shape_cast %243 : vector<2x8xf32> to vector<2x8x1xf32>
    %245 = vector.broadcast %244 : vector<2x8x1xf32> to vector<2x8x8xf32>
    %246 = arith.subf %242, %245 : vector<2x8x8xf32>
    %247 = math.exp %246 : vector<2x8x8xf32>
    %cst_56 = arith.constant dense<0.000000e+00> : vector<2x8xf32>
    %248 = vector.multi_reduction <add>, %247, %cst_56 [2] : vector<2x8x8xf32> to vector<2x8xf32>
    %249 = vector.shape_cast %248 : vector<2x8xf32> to vector<2x8x1xf32>
    %250 = tpu.reciprocal %249 {approx = true} : vector<2x8x1xf32> -> vector<2x8x1xf32>
    %251 = vector.broadcast %250 : vector<2x8x1xf32> to vector<2x8x8xf32>
    %252 = arith.mulf %247, %251 : vector<2x8x8xf32>
    %253 = arith.truncf %252 : vector<2x8x8xf32> to vector<2x8x8xbf16>
    "tpu.trace_start"() <{level = 10 : i32, message = "bqk,bkd->bqd"}> : () -> ()
    %cst_57 = arith.constant dense<0.000000e+00> : vector<2x8x16xf32>
    %254 = tpu.matmul %253, %239, %cst_57 {dimension_numbers = #tpu.dot_dimension_numbers<[2], [1], [1], [2], [0, 0, 0, 1, 1, 2], [0], [0]>} : vector<2x8x8xbf16>, vector<2x8x16xbf16>, vector<2x8x16xf32> -> vector<2x8x16xf32>
    "tpu.trace_stop"() : () -> ()
    %255 = arith.truncf %254 : vector<2x8x16xf32> to vector<2x8x16xbf16>
    %256 = vector.extract_strided_slice %215 {offsets = [16, 0], sizes = [16, 32], strides = [1, 1]} : vector<32x32xbf16> to vector<16x32xbf16>
    "tpu.trace_start"() <{level = 10 : i32, message = "bqd,dh->bqh"}> : () -> ()
    %cst_58 = arith.constant dense<0.000000e+00> : vector<2x8x32xf32>
    %257 = tpu.matmul %255, %256, %cst_58 {dimension_numbers = #tpu.dot_dimension_numbers<[2], [0], [0, 1], [1], [0, 0, 0, 1, 1, 1], [], []>} : vector<2x8x16xbf16>, vector<16x32xbf16>, vector<2x8x32xf32> -> vector<2x8x32xf32>
    "tpu.trace_stop"() : () -> ()
    %258 = arith.addf %236, %257 : vector<2x8x32xf32>
    %259 = vector.extract_strided_slice %0 {offsets = [11, 0], sizes = [1, 32], strides = [1, 1]} : vector<20x128xf32> to vector<1x32xf32>
    %260 = vector.shape_cast %259 : vector<1x32xf32> to vector<1x1x32xf32>
    %261 = vector.broadcast %260 : vector<1x1x32xf32> to vector<2x8x32xf32>
    %262 = arith.addf %258, %261 : vector<2x8x32xf32>
    %263 = arith.addf %204, %262 : vector<2x8x32xf32>
    %264 = vector.extract_strided_slice %0 {offsets = [12, 0], sizes = [1, 32], strides = [1, 1]} : vector<20x128xf32> to vector<1x32xf32>
    %265 = vector.extract_strided_slice %0 {offsets = [13, 0], sizes = [1, 32], strides = [1, 1]} : vector<20x128xf32> to vector<1x32xf32>
    %cst_59 = arith.constant dense<0.000000e+00> : vector<2x8xf32>
    %266 = vector.multi_reduction <add>, %263, %cst_59 [2] : vector<2x8x32xf32> to vector<2x8xf32>
    %267 = vector.shape_cast %266 : vector<2x8xf32> to vector<2x8x1xf32>
    %cst_60 = arith.constant 3.200000e+01 : f32
    %268 = vector.broadcast %cst_60 : f32 to vector<2x8x1xf32>
    %269 = arith.divf %267, %268 : vector<2x8x1xf32>
    %270 = vector.broadcast %269 : vector<2x8x1xf32> to vector<2x8x32xf32>
    %271 = arith.subf %263, %270 : vector<2x8x32xf32>
    %272 = arith.mulf %271, %271 : vector<2x8x32xf32>
    %cst_61 = arith.constant dense<0.000000e+00> : vector<2x8xf32>
    %273 = vector.multi_reduction <add>, %272, %cst_61 [2] : vector<2x8x32xf32> to vector<2x8xf32>
    %274 = vector.shape_cast %273 : vector<2x8xf32> to vector<2x8x1xf32>
    %cst_62 = arith.constant 3.200000e+01 : f32
    %275 = vector.broadcast %cst_62 : f32 to vector<2x8x1xf32>
    %276 = arith.divf %274, %275 : vector<2x8x1xf32>
    %277 = vector.broadcast %269 : vector<2x8x1xf32> to vector<2x8x32xf32>
    %278 = arith.subf %263, %277 : vector<2x8x32xf32>
    %cst_63 = arith.constant 9.99999996E-13 : f32
    %279 = vector.broadcast %cst_63 : f32 to vector<2x8x1xf32>
    %280 = arith.addf %276, %279 : vector<2x8x1xf32>
    %281 = math.rsqrt %280 : vector<2x8x1xf32>
    %282 = vector.broadcast %281 : vector<2x8x1xf32> to vector<2x8x32xf32>
    %283 = arith.mulf %278, %282 : vector<2x8x32xf32>
    %284 = vector.shape_cast %264 : vector<1x32xf32> to vector<1x1x32xf32>
    %285 = vector.broadcast %284 : vector<1x1x32xf32> to vector<2x8x32xf32>
    %286 = arith.mulf %283, %285 : vector<2x8x32xf32>
    %287 = vector.shape_cast %265 : vector<1x32xf32> to vector<1x1x32xf32>
    %288 = vector.broadcast %287 : vector<1x1x32xf32> to vector<2x8x32xf32>
    %289 = arith.addf %286, %288 : vector<2x8x32xf32>
    %c1_64 = arith.constant 1 : index
    %c0_65 = arith.constant 0 : index
    %c0_66 = arith.constant 0 : index
    %290 = vector.load %arg2[%c1_64, %c0_65, %c0_66] : memref<2x64x64xbf16, #tpu.memory_space<vmem>>, vector<1x64x64xbf16>
    %291 = vector.shape_cast %290 : vector<1x64x64xbf16> to vector<64x64xbf16>
    %292 = arith.truncf %289 : vector<2x8x32xf32> to vector<2x8x32xbf16>
    %293 = vector.extract_strided_slice %291 {offsets = [0, 0], sizes = [32, 64], strides = [1, 1]} : vector<64x64xbf16> to vector<32x64xbf16>
    "tpu.trace_start"() <{level = 10 : i32, message = "bsh,hi->bsi"}> : () -> ()
    %cst_67 = arith.constant dense<0.000000e+00> : vector<2x8x64xf32>
    %294 = tpu.matmul %292, %293, %cst_67 {dimension_numbers = #tpu.dot_dimension_numbers<[2], [0], [0, 1], [1], [0, 0, 0, 1, 1, 1], [], []>} : vector<2x8x32xbf16>, vector<32x64xbf16>, vector<2x8x64xf32> -> vector<2x8x64xf32>
    "tpu.trace_stop"() : () -> ()
    %295 = vector.extract_strided_slice %0 {offsets = [14, 0], sizes = [1, 64], strides = [1, 1]} : vector<20x128xf32> to vector<1x64xf32>
    %296 = vector.shape_cast %295 : vector<1x64xf32> to vector<1x1x64xf32>
    %297 = vector.broadcast %296 : vector<1x1x64xf32> to vector<2x8x64xf32>
    %298 = arith.addf %294, %297 : vector<2x8x64xf32>
    %299 = arith.mulf %298, %298 : vector<2x8x64xf32>
    %300 = arith.mulf %298, %299 : vector<2x8x64xf32>
    %cst_68 = arith.constant 4.471500e-02 : f32
    %301 = vector.broadcast %cst_68 : f32 to vector<2x8x64xf32>
    %302 = arith.mulf %301, %300 : vector<2x8x64xf32>
    %303 = arith.addf %298, %302 : vector<2x8x64xf32>
    %cst_69 = arith.constant 0.797884583 : f32
    %304 = vector.broadcast %cst_69 : f32 to vector<2x8x64xf32>
    %305 = arith.mulf %304, %303 : vector<2x8x64xf32>
    %306 = math.tanh %305 : vector<2x8x64xf32>
    %cst_70 = arith.constant 1.000000e+00 : f32
    %307 = vector.broadcast %cst_70 : f32 to vector<2x8x64xf32>
    %308 = arith.addf %307, %306 : vector<2x8x64xf32>
    %cst_71 = arith.constant 5.000000e-01 : f32
    %309 = vector.broadcast %cst_71 : f32 to vector<2x8x64xf32>
    %310 = arith.mulf %309, %308 : vector<2x8x64xf32>
    %311 = arith.mulf %298, %310 : vector<2x8x64xf32>
    %312 = arith.truncf %311 : vector<2x8x64xf32> to vector<2x8x64xbf16>
    %313 = vector.extract_strided_slice %291 {offsets = [32, 0], sizes = [32, 64], strides = [1, 1]} : vector<64x64xbf16> to vector<32x64xbf16>
    "tpu.trace_start"() <{level = 10 : i32, message = "bsi,hi->bsh"}> : () -> ()
    %cst_72 = arith.constant dense<0.000000e+00> : vector<2x8x32xf32>
    %314 = tpu.matmul %312, %313, %cst_72 {dimension_numbers = #tpu.dot_dimension_numbers<[2], [1], [0, 1], [0], [0, 0, 0, 1, 1, 0], [], []>} : vector<2x8x64xbf16>, vector<32x64xbf16>, vector<2x8x32xf32> -> vector<2x8x32xf32>
    "tpu.trace_stop"() : () -> ()
    %315 = vector.extract_strided_slice %0 {offsets = [15, 0], sizes = [1, 32], strides = [1, 1]} : vector<20x128xf32> to vector<1x32xf32>
    %316 = vector.shape_cast %315 : vector<1x32xf32> to vector<1x1x32xf32>
    %317 = vector.broadcast %316 : vector<1x1x32xf32> to vector<2x8x32xf32>
    %318 = arith.addf %314, %317 : vector<2x8x32xf32>
    %319 = arith.addf %289, %318 : vector<2x8x32xf32>
    %320 = vector.extract_strided_slice %0 {offsets = [16, 0], sizes = [1, 32], strides = [1, 1]} : vector<20x128xf32> to vector<1x32xf32>
    %321 = vector.extract_strided_slice %0 {offsets = [17, 0], sizes = [1, 32], strides = [1, 1]} : vector<20x128xf32> to vector<1x32xf32>
    %cst_73 = arith.constant dense<0.000000e+00> : vector<2x8xf32>
    %322 = vector.multi_reduction <add>, %319, %cst_73 [2] : vector<2x8x32xf32> to vector<2x8xf32>
    %323 = vector.shape_cast %322 : vector<2x8xf32> to vector<2x8x1xf32>
    %cst_74 = arith.constant 3.200000e+01 : f32
    %324 = vector.broadcast %cst_74 : f32 to vector<2x8x1xf32>
    %325 = arith.divf %323, %324 : vector<2x8x1xf32>
    %326 = vector.broadcast %325 : vector<2x8x1xf32> to vector<2x8x32xf32>
    %327 = arith.subf %319, %326 : vector<2x8x32xf32>
    %328 = arith.mulf %327, %327 : vector<2x8x32xf32>
    %cst_75 = arith.constant dense<0.000000e+00> : vector<2x8xf32>
    %329 = vector.multi_reduction <add>, %328, %cst_75 [2] : vector<2x8x32xf32> to vector<2x8xf32>
    %330 = vector.shape_cast %329 : vector<2x8xf32> to vector<2x8x1xf32>
    %cst_76 = arith.constant 3.200000e+01 : f32
    %331 = vector.broadcast %cst_76 : f32 to vector<2x8x1xf32>
    %332 = arith.divf %330, %331 : vector<2x8x1xf32>
    %333 = vector.broadcast %325 : vector<2x8x1xf32> to vector<2x8x32xf32>
    %334 = arith.subf %319, %333 : vector<2x8x32xf32>
    %cst_77 = arith.constant 9.99999996E-13 : f32
    %335 = vector.broadcast %cst_77 : f32 to vector<2x8x1xf32>
    %336 = arith.addf %332, %335 : vector<2x8x1xf32>
    %337 = math.rsqrt %336 : vector<2x8x1xf32>
    %338 = vector.broadcast %337 : vector<2x8x1xf32> to vector<2x8x32xf32>
    %339 = arith.mulf %334, %338 : vector<2x8x32xf32>
    %340 = vector.shape_cast %320 : vector<1x32xf32> to vector<1x1x32xf32>
    %341 = vector.broadcast %340 : vector<1x1x32xf32> to vector<2x8x32xf32>
    %342 = arith.mulf %339, %341 : vector<2x8x32xf32>
    %343 = vector.shape_cast %321 : vector<1x32xf32> to vector<1x1x32xf32>
    %344 = vector.broadcast %343 : vector<1x1x32xf32> to vector<2x8x32xf32>
    %345 = arith.addf %342, %344 : vector<2x8x32xf32>
    %346 = vector.extract_strided_slice %345 {offsets = [0, 0, 0], sizes = [2, 1, 32], strides = [1, 1, 1]} : vector<2x8x32xf32> to vector<2x1x32xf32>
    %347 = arith.truncf %346 : vector<2x1x32xf32> to vector<2x1x32xbf16>
    %c3 = arith.constant 3 : index
    %c0_78 = arith.constant 0 : index
    %c0_79 = arith.constant 0 : index
    %348 = vector.load %arg1[%c3, %c0_78, %c0_79] : memref<5x32x128xbf16, #tpu.memory_space<vmem>>, vector<1x32x128xbf16>
    %349 = vector.shape_cast %348 : vector<1x32x128xbf16> to vector<32x128xbf16>
    %350 = vector.extract_strided_slice %349 {offsets = [0, 0], sizes = [32, 32], strides = [1, 1]} : vector<32x128xbf16> to vector<32x32xbf16>
    "tpu.trace_start"() <{level = 10 : i32, message = "bsh,hk->bsk"}> : () -> ()
    %cst_80 = arith.constant dense<0.000000e+00> : vector<2x1x32xf32>
    %351 = tpu.matmul %347, %350, %cst_80 {dimension_numbers = #tpu.dot_dimension_numbers<[2], [0], [0, 1], [1], [0, 0, 0, 1, 1, 1], [], []>} : vector<2x1x32xbf16>, vector<32x32xbf16>, vector<2x1x32xf32> -> vector<2x1x32xf32>
    "tpu.trace_stop"() : () -> ()
    %352 = vector.extract_strided_slice %0 {offsets = [18, 0], sizes = [1, 32], strides = [1, 1]} : vector<20x128xf32> to vector<1x32xf32>
    %353 = vector.shape_cast %352 : vector<1x32xf32> to vector<1x1x32xf32>
    %354 = vector.broadcast %353 : vector<1x1x32xf32> to vector<2x1x32xf32>
    %355 = arith.addf %351, %354 : vector<2x1x32xf32>
    %356 = math.tanh %355 : vector<2x1x32xf32>
    %357 = arith.truncf %356 : vector<2x1x32xf32> to vector<2x1x32xbf16>
    %c4 = arith.constant 4 : index
    %c0_81 = arith.constant 0 : index
    %c0_82 = arith.constant 0 : index
    %358 = vector.load %arg1[%c4, %c0_81, %c0_82] : memref<5x32x128xbf16, #tpu.memory_space<vmem>>, vector<1x32x128xbf16>
    %359 = vector.shape_cast %358 : vector<1x32x128xbf16> to vector<32x128xbf16>
    "tpu.trace_start"() <{level = 10 : i32, message = "bsh,hk->bsk"}> : () -> ()
    %cst_83 = arith.constant dense<0.000000e+00> : vector<2x1x128xf32>
    %360 = tpu.matmul %357, %359, %cst_83 {dimension_numbers = #tpu.dot_dimension_numbers<[2], [0], [0, 1], [1], [0, 0, 0, 1, 1, 1], [], []>} : vector<2x1x32xbf16>, vector<32x128xbf16>, vector<2x1x128xf32> -> vector<2x1x128xf32>
    "tpu.trace_stop"() : () -> ()
    %361 = vector.extract_strided_slice %0 {offsets = [19, 0], sizes = [1, 128], strides = [1, 1]} : vector<20x128xf32> to vector<1x128xf32>
    %362 = vector.shape_cast %361 : vector<1x128xf32> to vector<1x1x128xf32>
    %363 = vector.broadcast %362 : vector<1x1x128xf32> to vector<2x1x128xf32>
    %364 = arith.addf %360, %363 : vector<2x1x128xf32>
    %365 = vector.shape_cast %364 : vector<2x1x128xf32> to vector<2x128xf32>
    %c0_84 = arith.constant 0 : index
    %c0_85 = arith.constant 0 : index
    %366 = vector.load %arg4[%c0_84, %c0_85] : memref<2x128xf32, #tpu.memory_space<vmem>>, vector<2x128xf32>
    tpu.vector_store %arg4[%c0_84, %c0_85], %365 {strides = array<i32>} : memref<2x128xf32, #tpu.memory_space<vmem>>, vector<2x128xf32>,
    return
  }
}

</mosaic_0001>

<llo_original>
// kernel: bert_classifier_forward.1
$region0: #{bert_classifier_forward.1}
  #allocation0 [shape = 'u32[]', space=smem, size = 0x4, offset = 0x4, fixed_abs, tag = 'smem constant byte address 0x4 - core index']
  #allocation1 [shape = 'u32[144,128]{1,0:T(1,128)}', space=vmem, size = 0x12000, scoped, tag = 'internal scratch']
  %s0 = inlined_call_operand.vmem [shape: s32[4,2,8], index: 0, kind: input, shape index: {}]
  %s1 = inlined_call_operand.hbm [shape: bf16[5,32,128], index: 1, kind: input, shape index: {}]
  %s2 = inlined_call_operand.hbm [shape: bf16[2,64,64], index: 2, kind: input, shape index: {}]
  %s3 = inlined_call_operand.vmem [shape: f32[20,128], index: 3, kind: input, shape index: {}]
  %s4 = inlined_call_operand.hbm [shape: f32[2,128], index: 4, kind: output, shape index: {}]
  %s5 = sld [smem:[#allocation0]]
  $region34: #{bert_classifier_forward.1} parent=0
    _
  %s7 = ssub.s32 1, %s5
  %s8 = scalar_select 0, %s7, %s5
  $region1: #{bert_classifier_forward.1} parent=0
    #allocation2 [shape = 'u8[40960]{0}', space=vmem, size = 0xa000, scoped, tag = 'input window, operand 1, single buffered']
    #allocation3 [shape = 's32[1]{0}', space=sflag, size = 0x4, scoped, tag = 'scoped memory for bert_classifier_forward.1']
    #allocation4 [shape = 's32[1]{0}', space=sflag, size = 0x4, scoped, tag = 'scoped memory for bert_classifier_forward.1']
    #allocation5 [shape = 'u8[32768]{0}', space=vmem, size = 0x8000, scoped, tag = 'input window, operand 2, single buffered']
    #allocation6 [shape = 's32[1]{0}', space=sflag, size = 0x4, scoped, tag = 'scoped memory for bert_classifier_forward.1']
    #allocation7 [shape = 'u8[1024]{0}', space=vmem, size = 0x400, scoped, tag = 'output window, operand 0, single buffered']
    %9 = vsyncpa [#allocation3], 0
    %10 = vsyncpa [#allocation6], 0
    %11 = vsyncpa [#allocation4], 0
    // Predicated region
    $region2: #{bert_classifier_forward.1} parent=1 // pred_check
      _
    $region3: #{bert_classifier_forward.1} parent=1 // pred_check_branch
      %13 = sbr.rel (0) target = $region5
    $region4: #{bert_classifier_forward.1} parent=1 // pred_region
      _
    $region5: #{bert_classifier_forward.1} parent=1 // pred_fallthru
      _
    // Predicated region
    $region6: #{bert_classifier_forward.1} parent=1 // pred_check
      _
    $region7: #{bert_classifier_forward.1} parent=1 // pred_check_branch
      %15 = sbr.rel (0) target = $region9
    $region8: #{bert_classifier_forward.1} parent=1 // pred_region
      %s17 = ssub.s32 1280, 1280
      %18 = vsyncadd [#allocation3], %s17
      %s19 = sshll.u32 [#allocation2], 4
      %s20 = int_to_ptr.vmem [resolvable:$true] %s19
      %25 = dma.hbm_to_vmem [thread:$0]  %s1, 1280, %s20, [#allocation3], 64, 64, 4
    $region9: #{bert_classifier_forward.1} parent=1 // pred_fallthru
      _
    // Predicated region
    $region10: #{bert_classifier_forward.1} parent=1 // pred_check
      _
    $region11: #{bert_classifier_forward.1} parent=1 // pred_check_branch
      %27 = sbr.rel (0) target = $region13
    $region12: #{bert_classifier_forward.1} parent=1 // pred_region
      %s29 = ssub.s32 1024, 1024
      %30 = vsyncadd [#allocation6], %s29
      %s31 = sshll.u32 [#allocation5], 4
      %s32 = int_to_ptr.vmem [resolvable:$true] %s31
      %37 = dma.hbm_to_vmem [thread:$0]  %s2, 1024, %s32, [#allocation6], 64, 64, 4
    $region13: #{bert_classifier_forward.1} parent=1 // pred_fallthru
      _
    // Predicated region
    $region14: #{bert_classifier_forward.1} parent=1 // pred_check
      _
    $region15: #{bert_classifier_forward.1} parent=1 // pred_check_branch
      %39 = sbr.rel (0) target = $region17
    $region16: #{bert_classifier_forward.1} parent=1 // pred_region
      _
    $region17: #{bert_classifier_forward.1} parent=1 // pred_fallthru
      _
    // Predicated region
    $region18: #{bert_classifier_forward.1} parent=1 // pred_check
      _
    $region19: #{bert_classifier_forward.1} parent=1 // pred_check_branch
      %41 = sbr.rel (0) target = $region21
    $region20: #{bert_classifier_forward.1} parent=1 // pred_region
      %42 = dma.done [#allocation3], 1280
    $region21: #{bert_classifier_forward.1} parent=1 // pred_fallthru
      _
    // Predicated region
    $region22: #{bert_classifier_forward.1} parent=1 // pred_check
      _
    $region23: #{bert_classifier_forward.1} parent=1 // pred_check_branch
      %44 = sbr.rel (0) target = $region25
    $region24: #{bert_classifier_forward.1} parent=1 // pred_region
      %45 = dma.done [#allocation6], 1024
    $region25: #{bert_classifier_forward.1} parent=1 // pred_fallthru
      _
    %v47 = vld [vmem:[%s3] sm:$0xff]
    %v48 = vld [vmem:[%s3 + $0x8] sm:$0xff]
    %v49 = vld [vmem:[%s3 + $0x10] sm:$0xf]
    %v50 = vld [vmem:[%s0] sm:$0x3]
    %v51 = vld [vmem:[%s0 + $0x2] sm:$0x3]
    %v52 = vld [vmem:[%s0 + $0x4] sm:$0x3]
    %v53 = vld [vmem:[%s0 + $0x6] sm:$0x3]
    %v54 = vlaneseq
    %v55 = vshrl.u32 %v54, 7
    %v56 = vsub.s32 0, %v55
    %v57 = vrot.slane %v50, %v56
    %59 = vbcast.lane.b32.xlu0 %v57, 256
    %v60 = vpop.permute.xlu0 %59
    %v61 = vlaneseq
    %v62 = vshrl.u32 %v61, 7
    %v63 = vsub.s32 1, %v62
    %v64 = vrot.slane %v50, %v63
    %66 = vbcast.lane.b32.xlu0 %v64, 256
    %v67 = vpop.permute.xlu0 %66
    %v68 = vlaneseq
    %v69 = vshrl.u32 %v68, 7
    %v70 = vsub.s32 0, %v69
    %v71 = vrot.slane %v51, %v70
    %73 = vbcast.lane.b32.xlu0 %v71, 256
    %v74 = vpop.permute.xlu0 %73
    %v75 = vlaneseq
    %v76 = vshrl.u32 %v75, 7
    %v77 = vsub.s32 1, %v76
    %v78 = vrot.slane %v51, %v77
    %80 = vbcast.lane.b32.xlu0 %v78, 256
    %v81 = vpop.permute.xlu0 %80
    %v82 = vlaneseq
    %v83 = vshrl.u32 %v82, 7
    %v84 = vsub.s32 0, %v83
    %v85 = vrot.slane %v52, %v84
    %87 = vbcast.lane.b32.xlu0 %v85, 256
    %v88 = vpop.permute.xlu0 %87
    %v89 = vlaneseq
    %v90 = vshrl.u32 %v89, 7
    %v91 = vsub.s32 1, %v90
    %v92 = vrot.slane %v52, %v91
    %94 = vbcast.lane.b32.xlu0 %v92, 256
    %v95 = vpop.permute.xlu0 %94
    %v96 = vcvt.s32.f32 %v53
    %v97 = vlaneseq
    %v98 = vand.u32 %v97, 127
    %vm99 = vcmp.eq.s32.totalorder %v98, %v60
    %vm100 = vcmp.eq.s32.totalorder %v98, %v67
    %v101 = vadd.s32 %v88, 100
    %v102 = vadd.s32 %v95, 100
    %vm103 = vcmp.eq.s32.totalorder %v98, %v101
    %vm104 = vcmp.eq.s32.totalorder %v98, %v102
    %vm105 = vmor %vm99, %vm103
    %vm106 = vmor %vm100, %vm104
    %v107 = vadd.s32 %v74, 116
    %v108 = vadd.s32 %v81, 116
    %vm109 = vcmp.eq.s32.totalorder %v98, %v107
    %vm110 = vcmp.eq.s32.totalorder %v98, %v108
    %vm111 = vmor %vm105, %vm109
    %vm112 = vmor %vm106, %vm110
    %v113 = vsel %vm111, 1, 0
    %v114 = vsel %vm112, 1, 0
    %v115 = vcvt.s32.f32 %v113
    %v116 = vcvt.s32.f32 %v114
    %v117 = vpack.c.bf16 %v115, %v115
    %v118 = vpack.c.bf16 %v116, %v116
    %v119 = vld [vmem:[#allocation2] sm:$0xf]
    %v120 = vld [vmem:[#allocation2 + $0x4] sm:$0xf]
    %v121 = vld [vmem:[#allocation2 + $0x8] sm:$0xf]
    %v122 = vld [vmem:[#allocation2 + $0xc] sm:$0xf]
    %v125 = vunpack.c.l.b16 %v117
    %v126 = vunpack.c.l.b16 %v118
    %v127 = vpack.c.b16 %v126, %v125
    %v133 = vunpack.c.l.b16 %v119
    %v134 = vunpack.c.l.b16 %v120
    %v135 = vunpack.c.l.b16 %v121
    %v136 = vunpack.c.l.b16 %v122
    %v137 = vpack.c.b16 %v134, %v133
    %v138 = vpack.c.b16 %v136, %v135
    %141 = vmatprep.subr.bf16.mxu0 0
    %142 = vmatpush1.bf16.xpose.msra.mxu0 %v137
    %143 = vmatprep.subr.bf16.mxu0 0
    %144 = vmatpush1.bf16.xpose.msra.mxu0 %v138
    %145 = vmatprep.subr.bf16.mxu0 0
    %146 = vmatpush1.bf16.xpose.msra.mxu0 0
    %147 = vmatprep.subr.bf16.mxu0 0
    %148 = vmatpush1.bf16.xpose.msra.mxu0 0
    %149 = vmatprep.subr.bf16.mxu0 0
    %150 = vmatpush1.bf16.xpose.msra.mxu0 0
    %151 = vmatprep.subr.bf16.mxu0 0
    %152 = vmatpush1.bf16.xpose.msra.mxu0 0
    %153 = vmatprep.subr.bf16.mxu0 0
    %154 = vmatpush1.bf16.xpose.msra.mxu0 0
    %155 = vmatprep.subr.bf16.mxu0 0
    %156 = vmatpush1.bf16.xpose.msra.mxu0 0
    %157 = vmatprep.subr.bf16.mxu0 0
    %158 = vmatpush1.bf16.xpose.msra.mxu0 0
    %159 = vmatprep.subr.bf16.mxu0 0
    %160 = vmatpush1.bf16.xpose.msra.mxu0 0
    %161 = vmatprep.subr.bf16.mxu0 0
    %162 = vmatpush1.bf16.xpose.msra.mxu0 0
    %163 = vmatprep.subr.bf16.mxu0 0
    %164 = vmatpush1.bf16.xpose.msra.mxu0 0
    %165 = vmatprep.subr.bf16.mxu0 0
    %166 = vmatpush1.bf16.xpose.msra.mxu0 0
    %167 = vmatprep.subr.bf16.mxu0 0
    %168 = vmatpush1.bf16.xpose.msra.mxu0 0
    %169 = vmatprep.subr.bf16.mxu0 0
    %170 = vmatpush1.bf16.xpose.msra.mxu0 0
    %171 = vmatprep.subr.bf16.mxu0 0
    %172 = vmatpush1.bf16.xpose.msra.mxu0 0
    %173 = vmatprep.mubr.bf16.mxu0 0
    %174 = vmatmul.mubr.bf16.gmra.mrb[0].mxu0 %v127
    %v175 = vpop.f32.mrb[0].mxu0
    %v176 = vadd.f32 0.0, %v175
    %v177 = vpop.f32.mrb[0].mxu0
    %v178 = vpop.f32.mrb[0].mxu0
    %v179 = vadd.f32 0.0, %v178
    %v180 = vpop.f32.mrb[0].mxu0
    %181 = vdwg.mxu0
    %vm182 = vcmask 261120
    %v183 = vsel %vm182, %v176, 0.0
    %184 = vadd.xlane.f32.xlu0 %v183
    %v185 = vpop.xlane.xlu0 %184
    %v186 = vsel %vm182, %v179, 0.0
    %187 = vadd.xlane.f32.xlu0 %v186
    %v188 = vpop.xlane.xlu0 %187
    %v189 = vrcp.pop 32.0
    %v190 = vmul.f32 %v185, %v189
    %v191 = vmul.f32 %v188, %v189
    %v192 = vsub.f32 %v176, %v190
    %v193 = vsub.f32 %v179, %v191
    %v194 = vmul.f32 %v192, %v192
    %v195 = vmul.f32 %v193, %v193
    %v196 = vsel %vm182, %v194, 0.0
    %197 = vadd.xlane.f32.xlu0 %v196
    %v198 = vpop.xlane.xlu0 %197
    %v199 = vsel %vm182, %v195, 0.0
    %200 = vadd.xlane.f32.xlu0 %v199
    %v201 = vpop.xlane.xlu0 %200
    %v202 = vmul.f32 %v198, %v189
    %v203 = vmul.f32 %v201, %v189
    %v204 = vadd.f32 %v202, 1e-12
    %v205 = vadd.f32 %v203, 1e-12
    %v206 = vrsqrt.pop %v204
    %v207 = vrsqrt.pop %v205
    %v208 = vmul.f32 %v192, %v206
    %v209 = vmul.f32 %v193, %v207
    %v210 = vlaneseq
    %v211 = vshrl.u32 %v210, 7
    %v212 = vsub.s32 0, %v211
    %v213 = vrot.slane %v47, %v212
    %v214 = vmul.f32 %v208, %v213
    %v215 = vmul.f32 %v209, %v213
    %v216 = vlaneseq
    %v217 = vshrl.u32 %v216, 7
    %v218 = vsub.s32 1, %v217
    %v219 = vrot.slane %v47, %v218
    %v220 = vadd.f32 %v214, %v219
    %v221 = vadd.f32 %v215, %v219
    %v222 = vsub.f32 1.0, %v96
    %v223 = vmul.f32 %v222, -1e+09
    %v226 = vunpack.c.l.s4 1966171168
    %v227 = vunpack.c.0.s8 %v226
    %v228 = vlaneseq
    %v229 = vshrl.u32 %v228, 7
    %v230 = vsub.s32 %v227, %v229
    %v231 = vrot.slane %v223, %v230
    %v232 = vcombine.high %v231, %v231
    %v234 = vunpack.c.l.s4 1966171168
    %v235 = vunpack.c.0.s8 %v234
    %v236 = vlaneseq
    %v237 = vshrl.u32 %v236, 7
    %v238 = vsub.s32 %v235, %v237
    %v239 = vrot.slane %v231, %v238
    %v241 = vunpack.c.l.s4 1966171168
    %v242 = vunpack.c.0.s8 %v241
    %v243 = vlaneseq
    %v244 = vshrl.u32 %v243, 7
    %v245 = vsub.s32 %v242, %v244
    %v246 = vrot.slane %v232, %v245
    %s247 = scalar_lea.vmem [#allocation2], 16
    %v248 = vld [vmem:[%s247] sm:$0xf]
    %v249 = vld [vmem:[%s247 + $0x4] sm:$0xf]
    %v250 = vld [vmem:[%s247 + $0x8] sm:$0xf]
    %v251 = vld [vmem:[%s247 + $0xc] sm:$0xf]
    %v252 = vpack.c.bf16 %v220, %v220
    %v253 = vpack.c.bf16 %v221, %v221
    %v254 = vlaneseq
    %v255 = vshrl.u32 %v254, 7
    %v256 = vsub.s32 2, %v255
    %v257 = vrot.slane %v47, %v256
    %v260 = vunpack.c.l.b16 %v252
    %v261 = vunpack.c.l.b16 %v253
    %v262 = vpack.c.b16 %v261, %v260
    %v267 = vunpack.c.l.b16 %v248
    %v268 = vunpack.c.l.b16 %v249
    %v269 = vunpack.c.l.b16 %v250
    %v270 = vunpack.c.l.b16 %v251
    %v271 = vpack.c.b16 %v268, %v267
    %v272 = vpack.c.b16 %v270, %v269
    %v276 = vsel %vm182, %v262, 0
    %278 = vmatprep.subr.bf16.mxu0 0
    %279 = vmatpush1.bf16.msra.mxu0 %v271
    %280 = vmatprep.subr.bf16.mxu0 0
    %281 = vmatpush1.bf16.msra.mxu0 %v272
    %282 = vmatprep.subr.bf16.mxu0 0
    %283 = vmatpush1.bf16.msra.mxu0 0
    %284 = vmatprep.subr.bf16.mxu0 0
    %285 = vmatpush1.bf16.msra.mxu0 0
    %286 = vmatprep.subr.bf16.mxu0 0
    %287 = vmatpush1.bf16.msra.mxu0 0
    %288 = vmatprep.subr.bf16.mxu0 0
    %289 = vmatpush1.bf16.msra.mxu0 0
    %290 = vmatprep.subr.bf16.mxu0 0
    %291 = vmatpush1.bf16.msra.mxu0 0
    %292 = vmatprep.subr.bf16.mxu0 0
    %293 = vmatpush1.bf16.msra.mxu0 0
    %294 = vmatprep.subr.bf16.mxu0 0
    %295 = vmatpush1.bf16.msra.mxu0 0
    %296 = vmatprep.subr.bf16.mxu0 0
    %297 = vmatpush1.bf16.msra.mxu0 0
    %298 = vmatprep.subr.bf16.mxu0 0
    %299 = vmatpush1.bf16.msra.mxu0 0
    %300 = vmatprep.subr.bf16.mxu0 0
    %301 = vmatpush1.bf16.msra.mxu0 0
    %302 = vmatprep.subr.bf16.mxu0 0
    %303 = vmatpush1.bf16.msra.mxu0 0
    %304 = vmatprep.subr.bf16.mxu0 0
    %305 = vmatpush1.bf16.msra.mxu0 0
    %306 = vmatprep.subr.bf16.mxu0 0
    %307 = vmatpush1.bf16.msra.mxu0 0
    %308 = vmatprep.subr.bf16.mxu0 0
    %309 = vmatpush1.bf16.msra.mxu0 0
    %310 = vmatprep.mubr.bf16.mxu0 0
    %311 = vmatmul.mubr.bf16.gmra.mrb[0].mxu0 %v276
    %v312 = vpop.f32.mrb[0].mxu0
    %v313 = vadd.f32 %v257, %v312
    %v314 = vpop.f32.mrb[0].mxu0
    %v315 = vpop.f32.mrb[0].mxu0
    %v316 = vadd.f32 %v257, %v315
    %v317 = vpop.f32.mrb[0].mxu0
    %318 = vdwg.mxu0
    %v319 = vpack.c.bf16 %v313, %v313
    %v320 = vpack.c.bf16 %v316, %v316
    %v321 = vlaneseq
    %v322 = vshrl.u32 %v321, 7
    %v323 = vsub.s32 0, %v322
    %v324 = vrot.slane %v239, %v323
    %v325 = vlaneseq
    %v326 = vshrl.u32 %v325, 7
    %v327 = vsub.s32 0, %v326
    %v328 = vrot.slane %v246, %v327
    %332 = vrot.lane.b32.xlu0 %v319, 96
    %v333 = vpop.permute.xlu0 %332
    %vm334 = vcmask 130048
    %v336 = vsel %vm334, %v319, 0
    %v339 = vsel %vm334, %v333, 0
    %341 = vmatprep.subr.bf16.mxu0 0
    %342 = vmatpush1.bf16.xpose.msra.mxu0 %v339
    %343 = vmatprep.subr.bf16.mxu0 0
    %344 = vmatpush1.bf16.xpose.msra.mxu0 0
    %345 = vmatprep.subr.bf16.mxu0 0
    %346 = vmatpush1.bf16.xpose.msra.mxu0 0
    %347 = vmatprep.subr.bf16.mxu0 0
    %348 = vmatpush1.bf16.xpose.msra.mxu0 0
    %349 = vmatprep.subr.bf16.mxu0 0
    %350 = vmatpush1.bf16.xpose.msra.mxu0 0
    %351 = vmatprep.subr.bf16.mxu0 0
    %352 = vmatpush1.bf16.xpose.msra.mxu0 0
    %353 = vmatprep.subr.bf16.mxu0 0
    %354 = vmatpush1.bf16.xpose.msra.mxu0 0
    %355 = vmatprep.subr.bf16.mxu0 0
    %356 = vmatpush1.bf16.xpose.msra.mxu0 0
    %357 = vmatprep.subr.bf16.mxu0 0
    %358 = vmatpush1.bf16.xpose.msra.mxu0 0
    %359 = vmatprep.subr.bf16.mxu0 0
    %360 = vmatpush1.bf16.xpose.msra.mxu0 0
    %361 = vmatprep.subr.bf16.mxu0 0
    %362 = vmatpush1.bf16.xpose.msra.mxu0 0
    %363 = vmatprep.subr.bf16.mxu0 0
    %364 = vmatpush1.bf16.xpose.msra.mxu0 0
    %365 = vmatprep.subr.bf16.mxu0 0
    %366 = vmatpush1.bf16.xpose.msra.mxu0 0
    %367 = vmatprep.subr.bf16.mxu0 0
    %368 = vmatpush1.bf16.xpose.msra.mxu0 0
    %369 = vmatprep.subr.bf16.mxu0 0
    %370 = vmatpush1.bf16.xpose.msra.mxu0 0
    %371 = vmatprep.subr.bf16.mxu0 0
    %372 = vmatpush1.bf16.xpose.msra.mxu0 0
    %373 = vmatprep.mubr.bf16.mxu0 0
    %374 = vmatmul.mubr.bf16.gmra.mrb[0].mxu0 %v336
    %v375 = vpop.f32.mrb[0].mxu0
    %v376 = vadd.f32 %v324, %v375
    %v377 = vpop.f32.mrb[0].mxu0
    %v378 = vpop.f32.mrb[0].mxu0
    %v379 = vpop.f32.mrb[0].mxu0
    %380 = vdwg.mxu0
    %382 = vrot.lane.b32.xlu0 %v320, 96
    %v383 = vpop.permute.xlu0 %382
    %v385 = vsel %vm334, %v320, 0
    %v388 = vsel %vm334, %v383, 0
    %390 = vmatprep.subr.bf16.mxu0 0
    %391 = vmatpush1.bf16.xpose.msra.mxu0 %v388
    %392 = vmatprep.subr.bf16.mxu0 0
    %393 = vmatpush1.bf16.xpose.msra.mxu0 0
    %394 = vmatprep.subr.bf16.mxu0 0
    %395 = vmatpush1.bf16.xpose.msra.mxu0 0
    %396 = vmatprep.subr.bf16.mxu0 0
    %397 = vmatpush1.bf16.xpose.msra.mxu0 0
    %398 = vmatprep.subr.bf16.mxu0 0
    %399 = vmatpush1.bf16.xpose.msra.mxu0 0
    %400 = vmatprep.subr.bf16.mxu0 0
    %401 = vmatpush1.bf16.xpose.msra.mxu0 0
    %402 = vmatprep.subr.bf16.mxu0 0
    %403 = vmatpush1.bf16.xpose.msra.mxu0 0
    %404 = vmatprep.subr.bf16.mxu0 0
    %405 = vmatpush1.bf16.xpose.msra.mxu0 0
    %406 = vmatprep.subr.bf16.mxu0 0
    %407 = vmatpush1.bf16.xpose.msra.mxu0 0
    %408 = vmatprep.subr.bf16.mxu0 0
    %409 = vmatpush1.bf16.xpose.msra.mxu0 0
    %410 = vmatprep.subr.bf16.mxu0 0
    %411 = vmatpush1.bf16.xpose.msra.mxu0 0
    %412 = vmatprep.subr.bf16.mxu0 0
    %413 = vmatpush1.bf16.xpose.msra.mxu0 0
    %414 = vmatprep.subr.bf16.mxu0 0
    %415 = vmatpush1.bf16.xpose.msra.mxu0 0
    %416 = vmatprep.subr.bf16.mxu0 0
    %417 = vmatpush1.bf16.xpose.msra.mxu0 0
    %418 = vmatprep.subr.bf16.mxu0 0
    %419 = vmatpush1.bf16.xpose.msra.mxu0 0
    %420 = vmatprep.subr.bf16.mxu0 0
    %421 = vmatpush1.bf16.xpose.msra.mxu0 0
    %422 = vmatprep.mubr.bf16.mxu0 0
    %423 = vmatmul.mubr.bf16.gmra.mrb[0].mxu0 %v385
    %v424 = vpop.f32.mrb[0].mxu0
    %v425 = vadd.f32 %v328, %v424
    %v426 = vpop.f32.mrb[0].mxu0
    %v427 = vpop.f32.mrb[0].mxu0
    %v428 = vpop.f32.mrb[0].mxu0
    %429 = vdwg.mxu0
    %vm430 = vcmask 64512
    %v431 = vsel %vm430, %v376, -inf
    %432 = vmax.xlane.f32.xlu0 %v431
    %v433 = vpop.xlane.xlu0 %432
    %v434 = vsel %vm430, %v425, -inf
    %435 = vmax.xlane.f32.xlu0 %v434
    %v436 = vpop.xlane.xlu0 %435
    %v437 = vsub.f32 %v376, %v433
    %v438 = vsub.f32 %v425, %v436
    %v439 = vmul.f32 %v437, 1.442695
    %v440 = vpow.pop %v439
    %v441 = vmul.f32 %v438, 1.442695
    %v442 = vpow.pop %v441
    %v443 = vsel %vm430, %v440, 0.0
    %444 = vadd.xlane.f32.xlu0 %v443
    %v445 = vpop.xlane.xlu0 %444
    %v446 = vsel %vm430, %v442, 0.0
    %447 = vadd.xlane.f32.xlu0 %v446
    %v448 = vpop.xlane.xlu0 %447
    %v449 = vrcp.pop %v445
    %v450 = vrcp.pop %v448
    %v451 = vmul.f32 %v440, %v449
    %v452 = vmul.f32 %v442, %v450
    %v453 = vpack.c.bf16 %v451, %v451
    %v454 = vpack.c.bf16 %v452, %v452
    %455 = vrot.lane.b32.xlu0 %v319, 64
    %v456 = vpop.permute.xlu0 %455
    %v458 = vsel %vm430, %v453, 0
    %vm460 = vcmask 1043456
    %v462 = vsel %vm460, %v456, 0
    %464 = vmatprep.subr.bf16.mxu0 0
    %465 = vmatpush1.bf16.msra.mxu0 %v462
    %466 = vmatprep.subr.bf16.mxu0 0
    %467 = vmatpush1.bf16.msra.mxu0 0
    %468 = vmatprep.subr.bf16.mxu0 0
    %469 = vmatpush1.bf16.msra.mxu0 0
    %470 = vmatprep.subr.bf16.mxu0 0
    %471 = vmatpush1.bf16.msra.mxu0 0
    %472 = vmatprep.subr.bf16.mxu0 0
    %473 = vmatpush1.bf16.msra.mxu0 0
    %474 = vmatprep.subr.bf16.mxu0 0
    %475 = vmatpush1.bf16.msra.mxu0 0
    %476 = vmatprep.subr.bf16.mxu0 0
    %477 = vmatpush1.bf16.msra.mxu0 0
    %478 = vmatprep.subr.bf16.mxu0 0
    %479 = vmatpush1.bf16.msra.mxu0 0
    %480 = vmatprep.subr.bf16.mxu0 0
    %481 = vmatpush1.bf16.msra.mxu0 0
    %482 = vmatprep.subr.bf16.mxu0 0
    %483 = vmatpush1.bf16.msra.mxu0 0
    %484 = vmatprep.subr.bf16.mxu0 0
    %485 = vmatpush1.bf16.msra.mxu0 0
    %486 = vmatprep.subr.bf16.mxu0 0
    %487 = vmatpush1.bf16.msra.mxu0 0
    %488 = vmatprep.subr.bf16.mxu0 0
    %489 = vmatpush1.bf16.msra.mxu0 0
    %490 = vmatprep.subr.bf16.mxu0 0
    %491 = vmatpush1.bf16.msra.mxu0 0
    %492 = vmatprep.subr.bf16.mxu0 0
    %493 = vmatpush1.bf16.msra.mxu0 0
    %494 = vmatprep.subr.bf16.mxu0 0
    %495 = vmatpush1.bf16.msra.mxu0 0
    %496 = vmatprep.mubr.bf16.mxu0 0
    %497 = vmatmul.mubr.bf16.gmra.mrb[0].mxu0 %v458
    %v498 = vpop.f32.mrb[0].mxu0
    %v499 = vadd.f32 0.0, %v498
    %v500 = vpop.f32.mrb[0].mxu0
    %v501 = vpop.f32.mrb[0].mxu0
    %v502 = vpop.f32.mrb[0].mxu0
    %503 = vdwg.mxu0
    %504 = vrot.lane.b32.xlu0 %v320, 64
    %v505 = vpop.permute.xlu0 %504
    %v507 = vsel %vm430, %v454, 0
    %v510 = vsel %vm460, %v505, 0
    %512 = vmatprep.subr.bf16.mxu0 0
    %513 = vmatpush1.bf16.msra.mxu0 %v510
    %514 = vmatprep.subr.bf16.mxu0 0
    %515 = vmatpush1.bf16.msra.mxu0 0
    %516 = vmatprep.subr.bf16.mxu0 0
    %517 = vmatpush1.bf16.msra.mxu0 0
    %518 = vmatprep.subr.bf16.mxu0 0
    %519 = vmatpush1.bf16.msra.mxu0 0
    %520 = vmatprep.subr.bf16.mxu0 0
    %521 = vmatpush1.bf16.msra.mxu0 0
    %522 = vmatprep.subr.bf16.mxu0 0
    %523 = vmatpush1.bf16.msra.mxu0 0
    %524 = vmatprep.subr.bf16.mxu0 0
    %525 = vmatpush1.bf16.msra.mxu0 0
    %526 = vmatprep.subr.bf16.mxu0 0
    %527 = vmatpush1.bf16.msra.mxu0 0
    %528 = vmatprep.subr.bf16.mxu0 0
    %529 = vmatpush1.bf16.msra.mxu0 0
    %530 = vmatprep.subr.bf16.mxu0 0
    %531 = vmatpush1.bf16.msra.mxu0 0
    %532 = vmatprep.subr.bf16.mxu0 0
    %533 = vmatpush1.bf16.msra.mxu0 0
    %534 = vmatprep.subr.bf16.mxu0 0
    %535 = vmatpush1.bf16.msra.mxu0 0
    %536 = vmatprep.subr.bf16.mxu0 0
    %537 = vmatpush1.bf16.msra.mxu0 0
    %538 = vmatprep.subr.bf16.mxu0 0
    %539 = vmatpush1.bf16.msra.mxu0 0
    %540 = vmatprep.subr.bf16.mxu0 0
    %541 = vmatpush1.bf16.msra.mxu0 0
    %542 = vmatprep.subr.bf16.mxu0 0
    %543 = vmatpush1.bf16.msra.mxu0 0
    %544 = vmatprep.mubr.bf16.mxu0 0
    %545 = vmatmul.mubr.bf16.gmra.mrb[0].mxu0 %v507
    %v546 = vpop.f32.mrb[0].mxu0
    %v547 = vadd.f32 0.0, %v546
    %v548 = vpop.f32.mrb[0].mxu0
    %v549 = vpop.f32.mrb[0].mxu0
    %v550 = vpop.f32.mrb[0].mxu0
    %551 = vdwg.mxu0
    %v552 = vpack.c.bf16 %v499, %v499
    %v553 = vpack.c.bf16 %v547, %v547
    %554 = vrot.lane.b32.xlu0 %v319, 112
    %v555 = vpop.permute.xlu0 %554
    %556 = vrot.lane.b32.xlu0 %v319, 80
    %v557 = vpop.permute.xlu0 %556
    %v559 = vsel %vm334, %v555, 0
    %v562 = vsel %vm334, %v557, 0
    %564 = vmatprep.subr.bf16.mxu0 0
    %565 = vmatpush1.bf16.xpose.msra.mxu0 %v562
    %566 = vmatprep.subr.bf16.mxu0 0
    %567 = vmatpush1.bf16.xpose.msra.mxu0 0
    %568 = vmatprep.subr.bf16.mxu0 0
    %569 = vmatpush1.bf16.xpose.msra.mxu0 0
    %570 = vmatprep.subr.bf16.mxu0 0
    %571 = vmatpush1.bf16.xpose.msra.mxu0 0
    %572 = vmatprep.subr.bf16.mxu0 0
    %573 = vmatpush1.bf16.xpose.msra.mxu0 0
    %574 = vmatprep.subr.bf16.mxu0 0
    %575 = vmatpush1.bf16.xpose.msra.mxu0 0
    %576 = vmatprep.subr.bf16.mxu0 0
    %577 = vmatpush1.bf16.xpose.msra.mxu0 0
    %578 = vmatprep.subr.bf16.mxu0 0
    %579 = vmatpush1.bf16.xpose.msra.mxu0 0
    %580 = vmatprep.subr.bf16.mxu0 0
    %581 = vmatpush1.bf16.xpose.msra.mxu0 0
    %582 = vmatprep.subr.bf16.mxu0 0
    %583 = vmatpush1.bf16.xpose.msra.mxu0 0
    %584 = vmatprep.subr.bf16.mxu0 0
    %585 = vmatpush1.bf16.xpose.msra.mxu0 0
    %586 = vmatprep.subr.bf16.mxu0 0
    %587 = vmatpush1.bf16.xpose.msra.mxu0 0
    %588 = vmatprep.subr.bf16.mxu0 0
    %589 = vmatpush1.bf16.xpose.msra.mxu0 0
    %590 = vmatprep.subr.bf16.mxu0 0
    %591 = vmatpush1.bf16.xpose.msra.mxu0 0
    %592 = vmatprep.subr.bf16.mxu0 0
    %593 = vmatpush1.bf16.xpose.msra.mxu0 0
    %594 = vmatprep.subr.bf16.mxu0 0
    %595 = vmatpush1.bf16.xpose.msra.mxu0 0
    %596 = vmatprep.mubr.bf16.mxu0 0
    %597 = vmatmul.mubr.bf16.gmra.mrb[0].mxu0 %v559
    %v598 = vpop.f32.mrb[0].mxu0
    %v599 = vadd.f32 %v324, %v598
    %v600 = vpop.f32.mrb[0].mxu0
    %v601 = vpop.f32.mrb[0].mxu0
    %v602 = vpop.f32.mrb[0].mxu0
    %603 = vdwg.mxu0
    %604 = vrot.lane.b32.xlu0 %v320, 112
    %v605 = vpop.permute.xlu0 %604
    %606 = vrot.lane.b32.xlu0 %v320, 80
    %v607 = vpop.permute.xlu0 %606
    %v609 = vsel %vm334, %v605, 0
    %v612 = vsel %vm334, %v607, 0
    %614 = vmatprep.subr.bf16.mxu0 0
    %615 = vmatpush1.bf16.xpose.msra.mxu0 %v612
    %616 = vmatprep.subr.bf16.mxu0 0
    %617 = vmatpush1.bf16.xpose.msra.mxu0 0
    %618 = vmatprep.subr.bf16.mxu0 0
    %619 = vmatpush1.bf16.xpose.msra.mxu0 0
    %620 = vmatprep.subr.bf16.mxu0 0
    %621 = vmatpush1.bf16.xpose.msra.mxu0 0
    %622 = vmatprep.subr.bf16.mxu0 0
    %623 = vmatpush1.bf16.xpose.msra.mxu0 0
    %624 = vmatprep.subr.bf16.mxu0 0
    %625 = vmatpush1.bf16.xpose.msra.mxu0 0
    %626 = vmatprep.subr.bf16.mxu0 0
    %627 = vmatpush1.bf16.xpose.msra.mxu0 0
    %628 = vmatprep.subr.bf16.mxu0 0
    %629 = vmatpush1.bf16.xpose.msra.mxu0 0
    %630 = vmatprep.subr.bf16.mxu0 0
    %631 = vmatpush1.bf16.xpose.msra.mxu0 0
    %632 = vmatprep.subr.bf16.mxu0 0
    %633 = vmatpush1.bf16.xpose.msra.mxu0 0
    %634 = vmatprep.subr.bf16.mxu0 0
    %635 = vmatpush1.bf16.xpose.msra.mxu0 0
    %636 = vmatprep.subr.bf16.mxu0 0
    %637 = vmatpush1.bf16.xpose.msra.mxu0 0
    %638 = vmatprep.subr.bf16.mxu0 0
    %639 = vmatpush1.bf16.xpose.msra.mxu0 0
    %640 = vmatprep.subr.bf16.mxu0 0
    %641 = vmatpush1.bf16.xpose.msra.mxu0 0
    %642 = vmatprep.subr.bf16.mxu0 0
    %643 = vmatpush1.bf16.xpose.msra.mxu0 0
    %644 = vmatprep.subr.bf16.mxu0 0
    %645 = vmatpush1.bf16.xpose.msra.mxu0 0
    %646 = vmatprep.mubr.bf16.mxu0 0
    %647 = vmatmul.mubr.bf16.gmra.mrb[0].mxu0 %v609
    %v648 = vpop.f32.mrb[0].mxu0
    %v649 = vadd.f32 %v328, %v648
    %v650 = vpop.f32.mrb[0].mxu0
    %v651 = vpop.f32.mrb[0].mxu0
    %v652 = vpop.f32.mrb[0].mxu0
    %653 = vdwg.mxu0
    %v654 = vsel %vm430, %v599, -inf
    %655 = vmax.xlane.f32.xlu0 %v654
    %v656 = vpop.xlane.xlu0 %655
    %v657 = vsel %vm430, %v649, -inf
    %658 = vmax.xlane.f32.xlu0 %v657
    %v659 = vpop.xlane.xlu0 %658
    %v660 = vsub.f32 %v599, %v656
    %v661 = vsub.f32 %v649, %v659
    %v662 = vmul.f32 %v660, 1.442695
    %v663 = vpow.pop %v662
    %v664 = vmul.f32 %v661, 1.442695
    %v665 = vpow.pop %v664
    %v666 = vsel %vm430, %v663, 0.0
    %667 = vadd.xlane.f32.xlu0 %v666
    %v668 = vpop.xlane.xlu0 %667
    %v669 = vsel %vm430, %v665, 0.0
    %670 = vadd.xlane.f32.xlu0 %v669
    %v671 = vpop.xlane.xlu0 %670
    %v672 = vrcp.pop %v668
    %v673 = vrcp.pop %v671
    %v674 = vmul.f32 %v663, %v672
    %v675 = vmul.f32 %v665, %v673
    %v676 = vpack.c.bf16 %v674, %v674
    %v677 = vpack.c.bf16 %v675, %v675
    %678 = vrot.lane.b32.xlu0 %v319, 48
    %v679 = vpop.permute.xlu0 %678
    %v681 = vsel %vm430, %v676, 0
    %v684 = vsel %vm460, %v679, 0
    %686 = vmatprep.subr.bf16.mxu0 0
    %687 = vmatpush1.bf16.msra.mxu0 %v684
    %688 = vmatprep.subr.bf16.mxu0 0
    %689 = vmatpush1.bf16.msra.mxu0 0
    %690 = vmatprep.subr.bf16.mxu0 0
    %691 = vmatpush1.bf16.msra.mxu0 0
    %692 = vmatprep.subr.bf16.mxu0 0
    %693 = vmatpush1.bf16.msra.mxu0 0
    %694 = vmatprep.subr.bf16.mxu0 0
    %695 = vmatpush1.bf16.msra.mxu0 0
    %696 = vmatprep.subr.bf16.mxu0 0
    %697 = vmatpush1.bf16.msra.mxu0 0
    %698 = vmatprep.subr.bf16.mxu0 0
    %699 = vmatpush1.bf16.msra.mxu0 0
    %700 = vmatprep.subr.bf16.mxu0 0
    %701 = vmatpush1.bf16.msra.mxu0 0
    %702 = vmatprep.subr.bf16.mxu0 0
    %703 = vmatpush1.bf16.msra.mxu0 0
    %704 = vmatprep.subr.bf16.mxu0 0
    %705 = vmatpush1.bf16.msra.mxu0 0
    %706 = vmatprep.subr.bf16.mxu0 0
    %707 = vmatpush1.bf16.msra.mxu0 0
    %708 = vmatprep.subr.bf16.mxu0 0
    %709 = vmatpush1.bf16.msra.mxu0 0
    %710 = vmatprep.subr.bf16.mxu0 0
    %711 = vmatpush1.bf16.msra.mxu0 0
    %712 = vmatprep.subr.bf16.mxu0 0
    %713 = vmatpush1.bf16.msra.mxu0 0
    %714 = vmatprep.subr.bf16.mxu0 0
    %715 = vmatpush1.bf16.msra.mxu0 0
    %716 = vmatprep.subr.bf16.mxu0 0
    %717 = vmatpush1.bf16.msra.mxu0 0
    %718 = vmatprep.mubr.bf16.mxu0 0
    %719 = vmatmul.mubr.bf16.gmra.mrb[0].mxu0 %v681
    %v720 = vpop.f32.mrb[0].mxu0
    %v721 = vadd.f32 0.0, %v720
    %v722 = vpop.f32.mrb[0].mxu0
    %v723 = vpop.f32.mrb[0].mxu0
    %v724 = vpop.f32.mrb[0].mxu0
    %725 = vdwg.mxu0
    %726 = vrot.lane.b32.xlu0 %v320, 48
    %v727 = vpop.permute.xlu0 %726
    %v729 = vsel %vm430, %v677, 0
    %v732 = vsel %vm460, %v727, 0
    %734 = vmatprep.subr.bf16.mxu0 0
    %735 = vmatpush1.bf16.msra.mxu0 %v732
    %736 = vmatprep.subr.bf16.mxu0 0
    %737 = vmatpush1.bf16.msra.mxu0 0
    %738 = vmatprep.subr.bf16.mxu0 0
    %739 = vmatpush1.bf16.msra.mxu0 0
    %740 = vmatprep.subr.bf16.mxu0 0
    %741 = vmatpush1.bf16.msra.mxu0 0
    %742 = vmatprep.subr.bf16.mxu0 0
    %743 = vmatpush1.bf16.msra.mxu0 0
    %744 = vmatprep.subr.bf16.mxu0 0
    %745 = vmatpush1.bf16.msra.mxu0 0
    %746 = vmatprep.subr.bf16.mxu0 0
    %747 = vmatpush1.bf16.msra.mxu0 0
    %748 = vmatprep.subr.bf16.mxu0 0
    %749 = vmatpush1.bf16.msra.mxu0 0
    %750 = vmatprep.subr.bf16.mxu0 0
    %751 = vmatpush1.bf16.msra.mxu0 0
    %752 = vmatprep.subr.bf16.mxu0 0
    %753 = vmatpush1.bf16.msra.mxu0 0
    %754 = vmatprep.subr.bf16.mxu0 0
    %755 = vmatpush1.bf16.msra.mxu0 0
    %756 = vmatprep.subr.bf16.mxu0 0
    %757 = vmatpush1.bf16.msra.mxu0 0
    %758 = vmatprep.subr.bf16.mxu0 0
    %759 = vmatpush1.bf16.msra.mxu0 0
    %760 = vmatprep.subr.bf16.mxu0 0
    %761 = vmatpush1.bf16.msra.mxu0 0
    %762 = vmatprep.subr.bf16.mxu0 0
    %763 = vmatpush1.bf16.msra.mxu0 0
    %764 = vmatprep.subr.bf16.mxu0 0
    %765 = vmatpush1.bf16.msra.mxu0 0
    %766 = vmatprep.mubr.bf16.mxu0 0
    %767 = vmatmul.mubr.bf16.gmra.mrb[0].mxu0 %v729
    %v768 = vpop.f32.mrb[0].mxu0
    %v769 = vadd.f32 0.0, %v768
    %v770 = vpop.f32.mrb[0].mxu0
    %v771 = vpop.f32.mrb[0].mxu0
    %v772 = vpop.f32.mrb[0].mxu0
    %773 = vdwg.mxu0
    %v774 = vpack.c.bf16 %v721, %v721
    %v775 = vpack.c.bf16 %v769, %v769
    %v778 = vunpack.c.l.b16 %v774
    %v779 = vunpack.c.l.b16 %v775
    %v780 = vpack.c.b16 %v779, %v778
    %781 = vrot.lane.b32.xlu0 %v272, 32
    %v782 = vpop.permute.xlu0 %781
    %v785 = vsel %vm334, %v780, 0
    %787 = vmatprep.subr.bf16.mxu0 0
    %788 = vmatpush1.bf16.msra.mxu0 %v782
    %789 = vmatprep.subr.bf16.mxu0 0
    %790 = vmatpush1.bf16.msra.mxu0 0
    %791 = vmatprep.subr.bf16.mxu0 0
    %792 = vmatpush1.bf16.msra.mxu0 0
    %793 = vmatprep.subr.bf16.mxu0 0
    %794 = vmatpush1.bf16.msra.mxu0 0
    %795 = vmatprep.subr.bf16.mxu0 0
    %796 = vmatpush1.bf16.msra.mxu0 0
    %797 = vmatprep.subr.bf16.mxu0 0
    %798 = vmatpush1.bf16.msra.mxu0 0
    %799 = vmatprep.subr.bf16.mxu0 0
    %800 = vmatpush1.bf16.msra.mxu0 0
    %801 = vmatprep.subr.bf16.mxu0 0
    %802 = vmatpush1.bf16.msra.mxu0 0
    %803 = vmatprep.subr.bf16.mxu0 0
    %804 = vmatpush1.bf16.msra.mxu0 0
    %805 = vmatprep.subr.bf16.mxu0 0
    %806 = vmatpush1.bf16.msra.mxu0 0
    %807 = vmatprep.subr.bf16.mxu0 0
    %808 = vmatpush1.bf16.msra.mxu0 0
    %809 = vmatprep.subr.bf16.mxu0 0
    %810 = vmatpush1.bf16.msra.mxu0 0
    %811 = vmatprep.subr.bf16.mxu0 0
    %812 = vmatpush1.bf16.msra.mxu0 0
    %813 = vmatprep.subr.bf16.mxu0 0
    %814 = vmatpush1.bf16.msra.mxu0 0
    %815 = vmatprep.subr.bf16.mxu0 0
    %816 = vmatpush1.bf16.msra.mxu0 0
    %817 = vmatprep.subr.bf16.mxu0 0
    %818 = vmatpush1.bf16.msra.mxu0 0
    %819 = vmatprep.mubr.bf16.mxu0 0
    %820 = vmatmul.mubr.bf16.gmra.mrb[0].mxu0 %v785
    %v821 = vpop.f32.mrb[0].mxu0
    %v822 = vadd.f32 0.0, %v821
    %v823 = vpop.f32.mrb[0].mxu0
    %v824 = vpop.f32.mrb[0].mxu0
    %v825 = vadd.f32 0.0, %v824
    %v826 = vpop.f32.mrb[0].mxu0
    %827 = vdwg.mxu0
    %v830 = vunpack.c.l.b16 %v552
    %v831 = vunpack.c.l.b16 %v553
    %v832 = vpack.c.b16 %v831, %v830
    %833 = vrot.lane.b32.xlu0 %v271, 32
    %v834 = vpop.permute.xlu0 %833
    %v837 = vsel %vm334, %v832, 0
    %839 = vmatprep.subr.bf16.mxu0 0
    %840 = vmatpush1.bf16.msra.mxu0 %v834
    %841 = vmatprep.subr.bf16.mxu0 0
    %842 = vmatpush1.bf16.msra.mxu0 0
    %843 = vmatprep.subr.bf16.mxu0 0
    %844 = vmatpush1.bf16.msra.mxu0 0
    %845 = vmatprep.subr.bf16.mxu0 0
    %846 = vmatpush1.bf16.msra.mxu0 0
    %847 = vmatprep.subr.bf16.mxu0 0
    %848 = vmatpush1.bf16.msra.mxu0 0
    %849 = vmatprep.subr.bf16.mxu0 0
    %850 = vmatpush1.bf16.msra.mxu0 0
    %851 = vmatprep.subr.bf16.mxu0 0
    %852 = vmatpush1.bf16.msra.mxu0 0
    %853 = vmatprep.subr.bf16.mxu0 0
    %854 = vmatpush1.bf16.msra.mxu0 0
    %855 = vmatprep.subr.bf16.mxu0 0
    %856 = vmatpush1.bf16.msra.mxu0 0
    %857 = vmatprep.subr.bf16.mxu0 0
    %858 = vmatpush1.bf16.msra.mxu0 0
    %859 = vmatprep.subr.bf16.mxu0 0
    %860 = vmatpush1.bf16.msra.mxu0 0
    %861 = vmatprep.subr.bf16.mxu0 0
    %862 = vmatpush1.bf16.msra.mxu0 0
    %863 = vmatprep.subr.bf16.mxu0 0
    %864 = vmatpush1.bf16.msra.mxu0 0
    %865 = vmatprep.subr.bf16.mxu0 0
    %866 = vmatpush1.bf16.msra.mxu0 0
    %867 = vmatprep.subr.bf16.mxu0 0
    %868 = vmatpush1.bf16.msra.mxu0 0
    %869 = vmatprep.subr.bf16.mxu0 0
    %870 = vmatpush1.bf16.msra.mxu0 0
    %871 = vmatprep.mubr.bf16.mxu0 0
    %872 = vmatmul.mubr.bf16.gmra.mrb[0].mxu0 %v837
    %v873 = vpop.f32.mrb[0].mxu0
    %v874 = vadd.f32 %v822, %v873
    %v875 = vpop.f32.mrb[0].mxu0
    %v876 = vpop.f32.mrb[0].mxu0
    %v877 = vadd.f32 %v825, %v876
    %v878 = vpop.f32.mrb[0].mxu0
    %879 = vdwg.mxu0
    %v880 = vlaneseq
    %v881 = vshrl.u32 %v880, 7
    %v882 = vsub.s32 3, %v881
    %v883 = vrot.slane %v47, %v882
    %v884 = vadd.f32 %v874, %v883
    %v885 = vadd.f32 %v877, %v883
    %v886 = vadd.f32 %v220, %v884
    %v887 = vadd.f32 %v221, %v885
    %v888 = vsel %vm182, %v886, 0.0
    %889 = vadd.xlane.f32.xlu0 %v888
    %v890 = vpop.xlane.xlu0 %889
    %v891 = vsel %vm182, %v887, 0.0
    %892 = vadd.xlane.f32.xlu0 %v891
    %v893 = vpop.xlane.xlu0 %892
    %v894 = vmul.f32 %v890, %v189
    %v895 = vmul.f32 %v893, %v189
    %v896 = vsub.f32 %v886, %v894
    %v897 = vsub.f32 %v887, %v895
    %v898 = vmul.f32 %v896, %v896
    %v899 = vmul.f32 %v897, %v897
    %v900 = vsel %vm182, %v898, 0.0
    %901 = vadd.xlane.f32.xlu0 %v900
    %v902 = vpop.xlane.xlu0 %901
    %v903 = vsel %vm182, %v899, 0.0
    %904 = vadd.xlane.f32.xlu0 %v903
    %v905 = vpop.xlane.xlu0 %904
    %v906 = vmul.f32 %v902, %v189
    %v907 = vmul.f32 %v905, %v189
    %v908 = vadd.f32 %v906, 1e-12
    %v909 = vadd.f32 %v907, 1e-12
    %v910 = vrsqrt.pop %v908
    %v911 = vrsqrt.pop %v909
    %v912 = vmul.f32 %v896, %v910
    %v913 = vmul.f32 %v897, %v911
    %v914 = vlaneseq
    %v915 = vshrl.u32 %v914, 7
    %v916 = vsub.s32 4, %v915
    %v917 = vrot.slane %v47, %v916
    %v918 = vmul.f32 %v912, %v917
    %v919 = vmul.f32 %v913, %v917
    %v920 = vlaneseq
    %v921 = vshrl.u32 %v920, 7
    %v922 = vsub.s32 5, %v921
    %v923 = vrot.slane %v47, %v922
    %v924 = vadd.f32 %v918, %v923
    %v925 = vadd.f32 %v919, %v923
    %v926 = vld [vmem:[#allocation5] sm:$0xf]
    %v927 = vld [vmem:[#allocation5 + $0x4] sm:$0xf]
    %v928 = vld [vmem:[#allocation5 + $0x8] sm:$0xf]
    %v929 = vld [vmem:[#allocation5 + $0xc] sm:$0xf]
    %v930 = vld [vmem:[#allocation5 + $0x10] sm:$0xf]
    %v931 = vld [vmem:[#allocation5 + $0x14] sm:$0xf]
    %v932 = vld [vmem:[#allocation5 + $0x18] sm:$0xf]
    %v933 = vld [vmem:[#allocation5 + $0x1c] sm:$0xf]
    %v934 = vpack.c.bf16 %v924, %v924
    %v935 = vpack.c.bf16 %v925, %v925
    %v936 = vlaneseq
    %v937 = vshrl.u32 %v936, 7
    %v938 = vsub.s32 6, %v937
    %v939 = vrot.slane %v47, %v938
    %v942 = vunpack.c.l.b16 %v934
    %v943 = vunpack.c.l.b16 %v935
    %v944 = vpack.c.b16 %v943, %v942
    %v949 = vunpack.c.l.b16 %v926
    %v950 = vunpack.c.l.b16 %v927
    %v951 = vunpack.c.l.b16 %v928
    %v952 = vunpack.c.l.b16 %v929
    %v953 = vpack.c.b16 %v950, %v949
    %v954 = vpack.c.b16 %v952, %v951
    %v958 = vsel %vm182, %v944, 0
    %960 = vmatprep.subr.bf16.mxu0 0
    %961 = vmatpush1.bf16.msra.mxu0 %v953
    %962 = vmatprep.subr.bf16.mxu0 0
    %963 = vmatpush1.bf16.msra.mxu0 %v954
    %964 = vmatprep.subr.bf16.mxu0 0
    %965 = vmatpush1.bf16.msra.mxu0 0
    %966 = vmatprep.subr.bf16.mxu0 0
    %967 = vmatpush1.bf16.msra.mxu0 0
    %968 = vmatprep.subr.bf16.mxu0 0
    %969 = vmatpush1.bf16.msra.mxu0 0
    %970 = vmatprep.subr.bf16.mxu0 0
    %971 = vmatpush1.bf16.msra.mxu0 0
    %972 = vmatprep.subr.bf16.mxu0 0
    %973 = vmatpush1.bf16.msra.mxu0 0
    %974 = vmatprep.subr.bf16.mxu0 0
    %975 = vmatpush1.bf16.msra.mxu0 0
    %976 = vmatprep.subr.bf16.mxu0 0
    %977 = vmatpush1.bf16.msra.mxu0 0
    %978 = vmatprep.subr.bf16.mxu0 0
    %979 = vmatpush1.bf16.msra.mxu0 0
    %980 = vmatprep.subr.bf16.mxu0 0
    %981 = vmatpush1.bf16.msra.mxu0 0
    %982 = vmatprep.subr.bf16.mxu0 0
    %983 = vmatpush1.bf16.msra.mxu0 0
    %984 = vmatprep.subr.bf16.mxu0 0
    %985 = vmatpush1.bf16.msra.mxu0 0
    %986 = vmatprep.subr.bf16.mxu0 0
    %987 = vmatpush1.bf16.msra.mxu0 0
    %988 = vmatprep.subr.bf16.mxu0 0
    %989 = vmatpush1.bf16.msra.mxu0 0
    %990 = vmatprep.subr.bf16.mxu0 0
    %991 = vmatpush1.bf16.msra.mxu0 0
    %992 = vmatprep.mubr.bf16.mxu0 0
    %993 = vmatmul.mubr.bf16.gmra.mrb[0].mxu0 %v958
    %v994 = vpop.f32.mrb[0].mxu0
    %v995 = vadd.f32 %v939, %v994
    %v996 = vpop.f32.mrb[0].mxu0
    %v997 = vpop.f32.mrb[0].mxu0
    %v998 = vadd.f32 %v939, %v997
    %v999 = vpop.f32.mrb[0].mxu0
    %1000 = vdwg.mxu0
    %v1001 = vmul.f32 %v995, %v995
    %v1002 = vmul.f32 %v998, %v998
    %v1003 = vmul.f32 %v995, %v1001
    %v1004 = vmul.f32 %v998, %v1002
    %v1005 = vmul.f32 %v1003, 0.044715
    %v1006 = vmul.f32 %v1004, 0.044715
    %v1007 = vadd.f32 %v995, %v1005
    %v1008 = vadd.f32 %v998, %v1006
    %v1009 = vmul.f32 %v1007, 0.7978846
    %v1010 = vmul.f32 %v1008, 0.7978846
    %v1011 = vtanh.pop %v1009
    %v1012 = vtanh.pop %v1010
    %v1013 = vadd.f32 %v1011, 1.0
    %v1014 = vadd.f32 %v1012, 1.0
    %v1015 = vmul.f32 %v1013, 0.5
    %v1016 = vmul.f32 %v1014, 0.5
    %v1017 = vmul.f32 %v995, %v1015
    %v1018 = vmul.f32 %v998, %v1016
    %v1019 = vpack.c.bf16 %v1017, %v1017
    %v1020 = vpack.c.bf16 %v1018, %v1018
    %v1021 = vlaneseq
    %v1022 = vshrl.u32 %v1021, 7
    %v1023 = vsub.s32 7, %v1022
    %v1024 = vrot.slane %v47, %v1023
    %v1027 = vunpack.c.l.b16 %v1019
    %v1028 = vunpack.c.l.b16 %v1020
    %v1029 = vpack.c.b16 %v1028, %v1027
    %v1034 = vunpack.c.l.b16 %v930
    %v1035 = vunpack.c.l.b16 %v931
    %v1036 = vunpack.c.l.b16 %v932
    %v1037 = vunpack.c.l.b16 %v933
    %v1038 = vpack.c.b16 %v1035, %v1034
    %v1039 = vpack.c.b16 %v1037, %v1036
    %vm1040 = vcmask 523264
    %v1042 = vsel %vm1040, %v1029, 0
    %v1045 = vsel %vm1040, %v1038, 0
    %v1048 = vsel %vm1040, %v1039, 0
    %1050 = vmatprep.subr.bf16.mxu0 0
    %1051 = vmatpush1.bf16.xpose.msra.mxu0 %v1045
    %1052 = vmatprep.subr.bf16.mxu0 0
    %1053 = vmatpush1.bf16.xpose.msra.mxu0 %v1048
    %1054 = vmatprep.subr.bf16.mxu0 0
    %1055 = vmatpush1.bf16.xpose.msra.mxu0 0
    %1056 = vmatprep.subr.bf16.mxu0 0
    %1057 = vmatpush1.bf16.xpose.msra.mxu0 0
    %1058 = vmatprep.subr.bf16.mxu0 0
    %1059 = vmatpush1.bf16.xpose.msra.mxu0 0
    %1060 = vmatprep.subr.bf16.mxu0 0
    %1061 = vmatpush1.bf16.xpose.msra.mxu0 0
    %1062 = vmatprep.subr.bf16.mxu0 0
    %1063 = vmatpush1.bf16.xpose.msra.mxu0 0
    %1064 = vmatprep.subr.bf16.mxu0 0
    %1065 = vmatpush1.bf16.xpose.msra.mxu0 0
    %1066 = vmatprep.subr.bf16.mxu0 0
    %1067 = vmatpush1.bf16.xpose.msra.mxu0 0
    %1068 = vmatprep.subr.bf16.mxu0 0
    %1069 = vmatpush1.bf16.xpose.msra.mxu0 0
    %1070 = vmatprep.subr.bf16.mxu0 0
    %1071 = vmatpush1.bf16.xpose.msra.mxu0 0
    %1072 = vmatprep.subr.bf16.mxu0 0
    %1073 = vmatpush1.bf16.xpose.msra.mxu0 0
    %1074 = vmatprep.subr.bf16.mxu0 0
    %1075 = vmatpush1.bf16.xpose.msra.mxu0 0
    %1076 = vmatprep.subr.bf16.mxu0 0
    %1077 = vmatpush1.bf16.xpose.msra.mxu0 0
    %1078 = vmatprep.subr.bf16.mxu0 0
    %1079 = vmatpush1.bf16.xpose.msra.mxu0 0
    %1080 = vmatprep.subr.bf16.mxu0 0
    %1081 = vmatpush1.bf16.xpose.msra.mxu0 0
    %1082 = vmatprep.mubr.bf16.mxu0 0
    %1083 = vmatmul.mubr.bf16.gmra.mrb[0].mxu0 %v1042
    %v1084 = vpop.f32.mrb[0].mxu0
    %v1085 = vadd.f32 %v1024, %v1084
    %v1086 = vpop.f32.mrb[0].mxu0
    %v1087 = vpop.f32.mrb[0].mxu0
    %v1088 = vadd.f32 %v1024, %v1087
    %v1089 = vpop.f32.mrb[0].mxu0
    %1090 = vdwg.mxu0
    %v1091 = vadd.f32 %v924, %v1085
    %v1092 = vadd.f32 %v925, %v1088
    %v1093 = vsel %vm182, %v1091, 0.0
    %1094 = vadd.xlane.f32.xlu0 %v1093
    %v1095 = vpop.xlane.xlu0 %1094
    %v1096 = vsel %vm182, %v1092, 0.0
    %1097 = vadd.xlane.f32.xlu0 %v1096
    %v1098 = vpop.xlane.xlu0 %1097
    %v1099 = vmul.f32 %v1095, %v189
    %v1100 = vmul.f32 %v1098, %v189
    %v1101 = vsub.f32 %v1091, %v1099
    %v1102 = vsub.f32 %v1092, %v1100
    %v1103 = vmul.f32 %v1101, %v1101
    %v1104 = vmul.f32 %v1102, %v1102
    %v1105 = vsel %vm182, %v1103, 0.0
    %1106 = vadd.xlane.f32.xlu0 %v1105
    %v1107 = vpop.xlane.xlu0 %1106
    %v1108 = vsel %vm182, %v1104, 0.0
    %1109 = vadd.xlane.f32.xlu0 %v1108
    %v1110 = vpop.xlane.xlu0 %1109
    %v1111 = vmul.f32 %v1107, %v189
    %v1112 = vmul.f32 %v1110, %v189
    %v1113 = vadd.f32 %v1111, 1e-12
    %v1114 = vadd.f32 %v1112, 1e-12
    %v1115 = vrsqrt.pop %v1113
    %v1116 = vrsqrt.pop %v1114
    %v1117 = vmul.f32 %v1101, %v1115
    %v1118 = vmul.f32 %v1102, %v1116
    %v1119 = vlaneseq
    %v1120 = vshrl.u32 %v1119, 7
    %v1121 = vsub.s32 0, %v1120
    %v1122 = vrot.slane %v48, %v1121
    %v1123 = vmul.f32 %v1117, %v1122
    %v1124 = vmul.f32 %v1118, %v1122
    %v1125 = vlaneseq
    %v1126 = vshrl.u32 %v1125, 7
    %v1127 = vsub.s32 1, %v1126
    %v1128 = vrot.slane %v48, %v1127
    %v1129 = vadd.f32 %v1123, %v1128
    %v1130 = vadd.f32 %v1124, %v1128
    %s1131 = scalar_lea.vmem [#allocation2], 32
    %v1132 = vld [vmem:[%s1131] sm:$0xf]
    %v1133 = vld [vmem:[%s1131 + $0x4] sm:$0xf]
    %v1134 = vld [vmem:[%s1131 + $0x8] sm:$0xf]
    %v1135 = vld [vmem:[%s1131 + $0xc] sm:$0xf]
    %v1136 = vpack.c.bf16 %v1129, %v1129
    %v1137 = vpack.c.bf16 %v1130, %v1130
    %v1138 = vlaneseq
    %v1139 = vshrl.u32 %v1138, 7
    %v1140 = vsub.s32 2, %v1139
    %v1141 = vrot.slane %v48, %v1140
    %v1144 = vunpack.c.l.b16 %v1136
    %v1145 = vunpack.c.l.b16 %v1137
    %v1146 = vpack.c.b16 %v1145, %v1144
    %v1151 = vunpack.c.l.b16 %v1132
    %v1152 = vunpack.c.l.b16 %v1133
    %v1153 = vunpack.c.l.b16 %v1134
    %v1154 = vunpack.c.l.b16 %v1135
    %v1155 = vpack.c.b16 %v1152, %v1151
    %v1156 = vpack.c.b16 %v1154, %v1153
    %v1160 = vsel %vm182, %v1146, 0
    %1162 = vmatprep.subr.bf16.mxu0 0
    %1163 = vmatpush1.bf16.msra.mxu0 %v1155
    %1164 = vmatprep.subr.bf16.mxu0 0
    %1165 = vmatpush1.bf16.msra.mxu0 %v1156
    %1166 = vmatprep.subr.bf16.mxu0 0
    %1167 = vmatpush1.bf16.msra.mxu0 0
    %1168 = vmatprep.subr.bf16.mxu0 0
    %1169 = vmatpush1.bf16.msra.mxu0 0
    %1170 = vmatprep.subr.bf16.mxu0 0
    %1171 = vmatpush1.bf16.msra.mxu0 0
    %1172 = vmatprep.subr.bf16.mxu0 0
    %1173 = vmatpush1.bf16.msra.mxu0 0
    %1174 = vmatprep.subr.bf16.mxu0 0
    %1175 = vmatpush1.bf16.msra.mxu0 0
    %1176 = vmatprep.subr.bf16.mxu0 0
    %1177 = vmatpush1.bf16.msra.mxu0 0
    %1178 = vmatprep.subr.bf16.mxu0 0
    %1179 = vmatpush1.bf16.msra.mxu0 0
    %1180 = vmatprep.subr.bf16.mxu0 0
    %1181 = vmatpush1.bf16.msra.mxu0 0
    %1182 = vmatprep.subr.bf16.mxu0 0
    %1183 = vmatpush1.bf16.msra.mxu0 0
    %1184 = vmatprep.subr.bf16.mxu0 0
    %1185 = vmatpush1.bf16.msra.mxu0 0
    %1186 = vmatprep.subr.bf16.mxu0 0
    %1187 = vmatpush1.bf16.msra.mxu0 0
    %1188 = vmatprep.subr.bf16.mxu0 0
    %1189 = vmatpush1.bf16.msra.mxu0 0
    %1190 = vmatprep.subr.bf16.mxu0 0
    %1191 = vmatpush1.bf16.msra.mxu0 0
    %1192 = vmatprep.subr.bf16.mxu0 0
    %1193 = vmatpush1.bf16.msra.mxu0 0
    %1194 = vmatprep.mubr.bf16.mxu0 0
    %1195 = vmatmul.mubr.bf16.gmra.mrb[0].mxu0 %v1160
    %v1196 = vpop.f32.mrb[0].mxu0
    %v1197 = vadd.f32 %v1141, %v1196
    %v1198 = vpop.f32.mrb[0].mxu0
    %v1199 = vpop.f32.mrb[0].mxu0
    %v1200 = vadd.f32 %v1141, %v1199
    %v1201 = vpop.f32.mrb[0].mxu0
    %1202 = vdwg.mxu0
    %v1203 = vpack.c.bf16 %v1197, %v1197
    %v1204 = vpack.c.bf16 %v1200, %v1200
    %1206 = vrot.lane.b32.xlu0 %v1203, 96
    %v1207 = vpop.permute.xlu0 %1206
    %v1209 = vsel %vm334, %v1203, 0
    %v1212 = vsel %vm334, %v1207, 0
    %1214 = vmatprep.subr.bf16.mxu0 0
    %1215 = vmatpush1.bf16.xpose.msra.mxu0 %v1212
    %1216 = vmatprep.subr.bf16.mxu0 0
    %1217 = vmatpush1.bf16.xpose.msra.mxu0 0
    %1218 = vmatprep.subr.bf16.mxu0 0
    %1219 = vmatpush1.bf16.xpose.msra.mxu0 0
    %1220 = vmatprep.subr.bf16.mxu0 0
    %1221 = vmatpush1.bf16.xpose.msra.mxu0 0
    %1222 = vmatprep.subr.bf16.mxu0 0
    %1223 = vmatpush1.bf16.xpose.msra.mxu0 0
    %1224 = vmatprep.subr.bf16.mxu0 0
    %1225 = vmatpush1.bf16.xpose.msra.mxu0 0
    %1226 = vmatprep.subr.bf16.mxu0 0
    %1227 = vmatpush1.bf16.xpose.msra.mxu0 0
    %1228 = vmatprep.subr.bf16.mxu0 0
    %1229 = vmatpush1.bf16.xpose.msra.mxu0 0
    %1230 = vmatprep.subr.bf16.mxu0 0
    %1231 = vmatpush1.bf16.xpose.msra.mxu0 0
    %1232 = vmatprep.subr.bf16.mxu0 0
    %1233 = vmatpush1.bf16.xpose.msra.mxu0 0
    %1234 = vmatprep.subr.bf16.mxu0 0
    %1235 = vmatpush1.bf16.xpose.msra.mxu0 0
    %1236 = vmatprep.subr.bf16.mxu0 0
    %1237 = vmatpush1.bf16.xpose.msra.mxu0 0
    %1238 = vmatprep.subr.bf16.mxu0 0
    %1239 = vmatpush1.bf16.xpose.msra.mxu0 0
    %1240 = vmatprep.subr.bf16.mxu0 0
    %1241 = vmatpush1.bf16.xpose.msra.mxu0 0
    %1242 = vmatprep.subr.bf16.mxu0 0
    %1243 = vmatpush1.bf16.xpose.msra.mxu0 0
    %1244 = vmatprep.subr.bf16.mxu0 0
    %1245 = vmatpush1.bf16.xpose.msra.mxu0 0
    %1246 = vmatprep.mubr.bf16.mxu0 0
    %1247 = vmatmul.mubr.bf16.gmra.mrb[0].mxu0 %v1209
    %v1248 = vpop.f32.mrb[0].mxu0
    %v1249 = vadd.f32 %v324, %v1248
    %v1250 = vpop.f32.mrb[0].mxu0
    %v1251 = vpop.f32.mrb[0].mxu0
    %v1252 = vpop.f32.mrb[0].mxu0
    %1253 = vdwg.mxu0
    %1255 = vrot.lane.b32.xlu0 %v1204, 96
    %v1256 = vpop.permute.xlu0 %1255
    %v1258 = vsel %vm334, %v1204, 0
    %v1261 = vsel %vm334, %v1256, 0
    %1263 = vmatprep.subr.bf16.mxu0 0
    %1264 = vmatpush1.bf16.xpose.msra.mxu0 %v1261
    %1265 = vmatprep.subr.bf16.mxu0 0
    %1266 = vmatpush1.bf16.xpose.msra.mxu0 0
    %1267 = vmatprep.subr.bf16.mxu0 0
    %1268 = vmatpush1.bf16.xpose.msra.mxu0 0
    %1269 = vmatprep.subr.bf16.mxu0 0
    %1270 = vmatpush1.bf16.xpose.msra.mxu0 0
    %1271 = vmatprep.subr.bf16.mxu0 0
    %1272 = vmatpush1.bf16.xpose.msra.mxu0 0
    %1273 = vmatprep.subr.bf16.mxu0 0
    %1274 = vmatpush1.bf16.xpose.msra.mxu0 0
    %1275 = vmatprep.subr.bf16.mxu0 0
    %1276 = vmatpush1.bf16.xpose.msra.mxu0 0
    %1277 = vmatprep.subr.bf16.mxu0 0
    %1278 = vmatpush1.bf16.xpose.msra.mxu0 0
    %1279 = vmatprep.subr.bf16.mxu0 0
    %1280 = vmatpush1.bf16.xpose.msra.mxu0 0
    %1281 = vmatprep.subr.bf16.mxu0 0
    %1282 = vmatpush1.bf16.xpose.msra.mxu0 0
    %1283 = vmatprep.subr.bf16.mxu0 0
    %1284 = vmatpush1.bf16.xpose.msra.mxu0 0
    %1285 = vmatprep.subr.bf16.mxu0 0
    %1286 = vmatpush1.bf16.xpose.msra.mxu0 0
    %1287 = vmatprep.subr.bf16.mxu0 0
    %1288 = vmatpush1.bf16.xpose.msra.mxu0 0
    %1289 = vmatprep.subr.bf16.mxu0 0
    %1290 = vmatpush1.bf16.xpose.msra.mxu0 0
    %1291 = vmatprep.subr.bf16.mxu0 0
    %1292 = vmatpush1.bf16.xpose.msra.mxu0 0
    %1293 = vmatprep.subr.bf16.mxu0 0
    %1294 = vmatpush1.bf16.xpose.msra.mxu0 0
    %1295 = vmatprep.mubr.bf16.mxu0 0
    %1296 = vmatmul.mubr.bf16.gmra.mrb[0].mxu0 %v1258
    %v1297 = vpop.f32.mrb[0].mxu0
    %v1298 = vadd.f32 %v328, %v1297
    %v1299 = vpop.f32.mrb[0].mxu0
    %v1300 = vpop.f32.mrb[0].mxu0
    %v1301 = vpop.f32.mrb[0].mxu0
    %1302 = vdwg.mxu0
    %v1303 = vsel %vm430, %v1249, -inf
    %1304 = vmax.xlane.f32.xlu0 %v1303
    %v1305 = vpop.xlane.xlu0 %1304
    %v1306 = vsel %vm430, %v1298, -inf
    %1307 = vmax.xlane.f32.xlu0 %v1306
    %v1308 = vpop.xlane.xlu0 %1307
    %v1309 = vsub.f32 %v1249, %v1305
    %v1310 = vsub.f32 %v1298, %v1308
    %v1311 = vmul.f32 %v1309, 1.442695
    %v1312 = vpow.pop %v1311
    %v1313 = vmul.f32 %v1310, 1.442695
    %v1314 = vpow.pop %v1313
    %v1315 = vsel %vm430, %v1312, 0.0
    %1316 = vadd.xlane.f32.xlu0 %v1315
    %v1317 = vpop.xlane.xlu0 %1316
    %v1318 = vsel %vm430, %v1314, 0.0
    %1319 = vadd.xlane.f32.xlu0 %v1318
    %v1320 = vpop.xlane.xlu0 %1319
    %v1321 = vrcp.pop %v1317
    %v1322 = vrcp.pop %v1320
    %v1323 = vmul.f32 %v1312, %v1321
    %v1324 = vmul.f32 %v1314, %v1322
    %v1325 = vpack.c.bf16 %v1323, %v1323
    %v1326 = vpack.c.bf16 %v1324, %v1324
    %1327 = vrot.lane.b32.xlu0 %v1203, 64
    %v1328 = vpop.permute.xlu0 %1327
    %v1330 = vsel %vm430, %v1325, 0
    %v1333 = vsel %vm460, %v1328, 0
    %1335 = vmatprep.subr.bf16.mxu0 0
    %1336 = vmatpush1.bf16.msra.mxu0 %v1333
    %1337 = vmatprep.subr.bf16.mxu0 0
    %1338 = vmatpush1.bf16.msra.mxu0 0
    %1339 = vmatprep.subr.bf16.mxu0 0
    %1340 = vmatpush1.bf16.msra.mxu0 0
    %1341 = vmatprep.subr.bf16.mxu0 0
    %1342 = vmatpush1.bf16.msra.mxu0 0
    %1343 = vmatprep.subr.bf16.mxu0 0
    %1344 = vmatpush1.bf16.msra.mxu0 0
    %1345 = vmatprep.subr.bf16.mxu0 0
    %1346 = vmatpush1.bf16.msra.mxu0 0
    %1347 = vmatprep.subr.bf16.mxu0 0
    %1348 = vmatpush1.bf16.msra.mxu0 0
    %1349 = vmatprep.subr.bf16.mxu0 0
    %1350 = vmatpush1.bf16.msra.mxu0 0
    %1351 = vmatprep.subr.bf16.mxu0 0
    %1352 = vmatpush1.bf16.msra.mxu0 0
    %1353 = vmatprep.subr.bf16.mxu0 0
    %1354 = vmatpush1.bf16.msra.mxu0 0
    %1355 = vmatprep.subr.bf16.mxu0 0
    %1356 = vmatpush1.bf16.msra.mxu0 0
    %1357 = vmatprep.subr.bf16.mxu0 0
    %1358 = vmatpush1.bf16.msra.mxu0 0
    %1359 = vmatprep.subr.bf16.mxu0 0
    %1360 = vmatpush1.bf16.msra.mxu0 0
    %1361 = vmatprep.subr.bf16.mxu0 0
    %1362 = vmatpush1.bf16.msra.mxu0 0
    %1363 = vmatprep.subr.bf16.mxu0 0
    %1364 = vmatpush1.bf16.msra.mxu0 0
    %1365 = vmatprep.subr.bf16.mxu0 0
    %1366 = vmatpush1.bf16.msra.mxu0 0
    %1367 = vmatprep.mubr.bf16.mxu0 0
    %1368 = vmatmul.mubr.bf16.gmra.mrb[0].mxu0 %v1330
    %v1369 = vpop.f32.mrb[0].mxu0
    %v1370 = vadd.f32 0.0, %v1369
    %v1371 = vpop.f32.mrb[0].mxu0
    %v1372 = vpop.f32.mrb[0].mxu0
    %v1373 = vpop.f32.mrb[0].mxu0
    %1374 = vdwg.mxu0
    %1375 = vrot.lane.b32.xlu0 %v1204, 64
    %v1376 = vpop.permute.xlu0 %1375
    %v1378 = vsel %vm430, %v1326, 0
    %v1381 = vsel %vm460, %v1376, 0
    %1383 = vmatprep.subr.bf16.mxu0 0
    %1384 = vmatpush1.bf16.msra.mxu0 %v1381
    %1385 = vmatprep.subr.bf16.mxu0 0
    %1386 = vmatpush1.bf16.msra.mxu0 0
    %1387 = vmatprep.subr.bf16.mxu0 0
    %1388 = vmatpush1.bf16.msra.mxu0 0
    %1389 = vmatprep.subr.bf16.mxu0 0
    %1390 = vmatpush1.bf16.msra.mxu0 0
    %1391 = vmatprep.subr.bf16.mxu0 0
    %1392 = vmatpush1.bf16.msra.mxu0 0
    %1393 = vmatprep.subr.bf16.mxu0 0
    %1394 = vmatpush1.bf16.msra.mxu0 0
    %1395 = vmatprep.subr.bf16.mxu0 0
    %1396 = vmatpush1.bf16.msra.mxu0 0
    %1397 = vmatprep.subr.bf16.mxu0 0
    %1398 = vmatpush1.bf16.msra.mxu0 0
    %1399 = vmatprep.subr.bf16.mxu0 0
    %1400 = vmatpush1.bf16.msra.mxu0 0
    %1401 = vmatprep.subr.bf16.mxu0 0
    %1402 = vmatpush1.bf16.msra.mxu0 0
    %1403 = vmatprep.subr.bf16.mxu0 0
    %1404 = vmatpush1.bf16.msra.mxu0 0
    %1405 = vmatprep.subr.bf16.mxu0 0
    %1406 = vmatpush1.bf16.msra.mxu0 0
    %1407 = vmatprep.subr.bf16.mxu0 0
    %1408 = vmatpush1.bf16.msra.mxu0 0
    %1409 = vmatprep.subr.bf16.mxu0 0
    %1410 = vmatpush1.bf16.msra.mxu0 0
    %1411 = vmatprep.subr.bf16.mxu0 0
    %1412 = vmatpush1.bf16.msra.mxu0 0
    %1413 = vmatprep.subr.bf16.mxu0 0
    %1414 = vmatpush1.bf16.msra.mxu0 0
    %1415 = vmatprep.mubr.bf16.mxu0 0
    %1416 = vmatmul.mubr.bf16.gmra.mrb[0].mxu0 %v1378
    %v1417 = vpop.f32.mrb[0].mxu0
    %v1418 = vadd.f32 0.0, %v1417
    %v1419 = vpop.f32.mrb[0].mxu0
    %v1420 = vpop.f32.mrb[0].mxu0
    %v1421 = vpop.f32.mrb[0].mxu0
    %1422 = vdwg.mxu0
    %v1423 = vpack.c.bf16 %v1370, %v1370
    %v1424 = vpack.c.bf16 %v1418, %v1418
    %1425 = vrot.lane.b32.xlu0 %v1203, 112
    %v1426 = vpop.permute.xlu0 %1425
    %1427 = vrot.lane.b32.xlu0 %v1203, 80
    %v1428 = vpop.permute.xlu0 %1427
    %v1430 = vsel %vm334, %v1426, 0
    %v1433 = vsel %vm334, %v1428, 0
    %1435 = vmatprep.subr.bf16.mxu0 0
    %1436 = vmatpush1.bf16.xpose.msra.mxu0 %v1433
    %1437 = vmatprep.subr.bf16.mxu0 0
    %1438 = vmatpush1.bf16.xpose.msra.mxu0 0
    %1439 = vmatprep.subr.bf16.mxu0 0
    %1440 = vmatpush1.bf16.xpose.msra.mxu0 0
    %1441 = vmatprep.subr.bf16.mxu0 0
    %1442 = vmatpush1.bf16.xpose.msra.mxu0 0
    %1443 = vmatprep.subr.bf16.mxu0 0
    %1444 = vmatpush1.bf16.xpose.msra.mxu0 0
    %1445 = vmatprep.subr.bf16.mxu0 0
    %1446 = vmatpush1.bf16.xpose.msra.mxu0 0
    %1447 = vmatprep.subr.bf16.mxu0 0
    %1448 = vmatpush1.bf16.xpose.msra.mxu0 0
    %1449 = vmatprep.subr.bf16.mxu0 0
    %1450 = vmatpush1.bf16.xpose.msra.mxu0 0
    %1451 = vmatprep.subr.bf16.mxu0 0
    %1452 = vmatpush1.bf16.xpose.msra.mxu0 0
    %1453 = vmatprep.subr.bf16.mxu0 0
    %1454 = vmatpush1.bf16.xpose.msra.mxu0 0
    %1455 = vmatprep.subr.bf16.mxu0 0
    %1456 = vmatpush1.bf16.xpose.msra.mxu0 0
    %1457 = vmatprep.subr.bf16.mxu0 0
    %1458 = vmatpush1.bf16.xpose.msra.mxu0 0
    %1459 = vmatprep.subr.bf16.mxu0 0
    %1460 = vmatpush1.bf16.xpose.msra.mxu0 0
    %1461 = vmatprep.subr.bf16.mxu0 0
    %1462 = vmatpush1.bf16.xpose.msra.mxu0 0
    %1463 = vmatprep.subr.bf16.mxu0 0
    %1464 = vmatpush1.bf16.xpose.msra.mxu0 0
    %1465 = vmatprep.subr.bf16.mxu0 0
    %1466 = vmatpush1.bf16.xpose.msra.mxu0 0
    %1467 = vmatprep.mubr.bf16.mxu0 0
    %1468 = vmatmul.mubr.bf16.gmra.mrb[0].mxu0 %v1430
    %v1469 = vpop.f32.mrb[0].mxu0
    %v1470 = vadd.f32 %v324, %v1469
    %v1471 = vpop.f32.mrb[0].mxu0
    %v1472 = vpop.f32.mrb[0].mxu0
    %v1473 = vpop.f32.mrb[0].mxu0
    %1474 = vdwg.mxu0
    %1475 = vrot.lane.b32.xlu0 %v1204, 112
    %v1476 = vpop.permute.xlu0 %1475
    %1477 = vrot.lane.b32.xlu0 %v1204, 80
    %v1478 = vpop.permute.xlu0 %1477
    %v1480 = vsel %vm334, %v1476, 0
    %v1483 = vsel %vm334, %v1478, 0
    %1485 = vmatprep.subr.bf16.mxu0 0
    %1486 = vmatpush1.bf16.xpose.msra.mxu0 %v1483
    %1487 = vmatprep.subr.bf16.mxu0 0
    %1488 = vmatpush1.bf16.xpose.msra.mxu0 0
    %1489 = vmatprep.subr.bf16.mxu0 0
    %1490 = vmatpush1.bf16.xpose.msra.mxu0 0
    %1491 = vmatprep.subr.bf16.mxu0 0
    %1492 = vmatpush1.bf16.xpose.msra.mxu0 0
    %1493 = vmatprep.subr.bf16.mxu0 0
    %1494 = vmatpush1.bf16.xpose.msra.mxu0 0
    %1495 = vmatprep.subr.bf16.mxu0 0
    %1496 = vmatpush1.bf16.xpose.msra.mxu0 0
    %1497 = vmatprep.subr.bf16.mxu0 0
    %1498 = vmatpush1.bf16.xpose.msra.mxu0 0
    %1499 = vmatprep.subr.bf16.mxu0 0
    %1500 = vmatpush1.bf16.xpose.msra.mxu0 0
    %1501 = vmatprep.subr.bf16.mxu0 0
    %1502 = vmatpush1.bf16.xpose.msra.mxu0 0
    %1503 = vmatprep.subr.bf16.mxu0 0
    %1504 = vmatpush1.bf16.xpose.msra.mxu0 0
    %1505 = vmatprep.subr.bf16.mxu0 0
    %1506 = vmatpush1.bf16.xpose.msra.mxu0 0
    %1507 = vmatprep.subr.bf16.mxu0 0
    %1508 = vmatpush1.bf16.xpose.msra.mxu0 0
    %1509 = vmatprep.subr.bf16.mxu0 0
    %1510 = vmatpush1.bf16.xpose.msra.mxu0 0
    %1511 = vmatprep.subr.bf16.mxu0 0
    %1512 = vmatpush1.bf16.xpose.msra.mxu0 0
    %1513 = vmatprep.subr.bf16.mxu0 0
    %1514 = vmatpush1.bf16.xpose.msra.mxu0 0
    %1515 = vmatprep.subr.bf16.mxu0 0
    %1516 = vmatpush1.bf16.xpose.msra.mxu0 0
    %1517 = vmatprep.mubr.bf16.mxu0 0
    %1518 = vmatmul.mubr.bf16.gmra.mrb[0].mxu0 %v1480
    %v1519 = vpop.f32.mrb[0].mxu0
    %v1520 = vadd.f32 %v328, %v1519
    %v1521 = vpop.f32.mrb[0].mxu0
    %v1522 = vpop.f32.mrb[0].mxu0
    %v1523 = vpop.f32.mrb[0].mxu0
    %1524 = vdwg.mxu0
    %v1525 = vsel %vm430, %v1470, -inf
    %1526 = vmax.xlane.f32.xlu0 %v1525
    %v1527 = vpop.xlane.xlu0 %1526
    %v1528 = vsel %vm430, %v1520, -inf
    %1529 = vmax.xlane.f32.xlu0 %v1528
    %v1530 = vpop.xlane.xlu0 %1529
    %v1531 = vsub.f32 %v1470, %v1527
    %v1532 = vsub.f32 %v1520, %v1530
    %v1533 = vmul.f32 %v1531, 1.442695
    %v1534 = vpow.pop %v1533
    %v1535 = vmul.f32 %v1532, 1.442695
    %v1536 = vpow.pop %v1535
    %v1537 = vsel %vm430, %v1534, 0.0
    %1538 = vadd.xlane.f32.xlu0 %v1537
    %v1539 = vpop.xlane.xlu0 %1538
    %v1540 = vsel %vm430, %v1536, 0.0
    %1541 = vadd.xlane.f32.xlu0 %v1540
    %v1542 = vpop.xlane.xlu0 %1541
    %v1543 = vrcp.pop %v1539
    %v1544 = vrcp.pop %v1542
    %v1545 = vmul.f32 %v1534, %v1543
    %v1546 = vmul.f32 %v1536, %v1544
    %v1547 = vpack.c.bf16 %v1545, %v1545
    %v1548 = vpack.c.bf16 %v1546, %v1546
    %1549 = vrot.lane.b32.xlu0 %v1203, 48
    %v1550 = vpop.permute.xlu0 %1549
    %v1552 = vsel %vm430, %v1547, 0
    %v1555 = vsel %vm460, %v1550, 0
    %1557 = vmatprep.subr.bf16.mxu0 0
    %1558 = vmatpush1.bf16.msra.mxu0 %v1555
    %1559 = vmatprep.subr.bf16.mxu0 0
    %1560 = vmatpush1.bf16.msra.mxu0 0
    %1561 = vmatprep.subr.bf16.mxu0 0
    %1562 = vmatpush1.bf16.msra.mxu0 0
    %1563 = vmatprep.subr.bf16.mxu0 0
    %1564 = vmatpush1.bf16.msra.mxu0 0
    %1565 = vmatprep.subr.bf16.mxu0 0
    %1566 = vmatpush1.bf16.msra.mxu0 0
    %1567 = vmatprep.subr.bf16.mxu0 0
    %1568 = vmatpush1.bf16.msra.mxu0 0
    %1569 = vmatprep.subr.bf16.mxu0 0
    %1570 = vmatpush1.bf16.msra.mxu0 0
    %1571 = vmatprep.subr.bf16.mxu0 0
    %1572 = vmatpush1.bf16.msra.mxu0 0
    %1573 = vmatprep.subr.bf16.mxu0 0
    %1574 = vmatpush1.bf16.msra.mxu0 0
    %1575 = vmatprep.subr.bf16.mxu0 0
    %1576 = vmatpush1.bf16.msra.mxu0 0
    %1577 = vmatprep.subr.bf16.mxu0 0
    %1578 = vmatpush1.bf16.msra.mxu0 0
    %1579 = vmatprep.subr.bf16.mxu0 0
    %1580 = vmatpush1.bf16.msra.mxu0 0
    %1581 = vmatprep.subr.bf16.mxu0 0
    %1582 = vmatpush1.bf16.msra.mxu0 0
    %1583 = vmatprep.subr.bf16.mxu0 0
    %1584 = vmatpush1.bf16.msra.mxu0 0
    %1585 = vmatprep.subr.bf16.mxu0 0
    %1586 = vmatpush1.bf16.msra.mxu0 0
    %1587 = vmatprep.subr.bf16.mxu0 0
    %1588 = vmatpush1.bf16.msra.mxu0 0
    %1589 = vmatprep.mubr.bf16.mxu0 0
    %1590 = vmatmul.mubr.bf16.gmra.mrb[0].mxu0 %v1552
    %v1591 = vpop.f32.mrb[0].mxu0
    %v1592 = vadd.f32 0.0, %v1591
    %v1593 = vpop.f32.mrb[0].mxu0
    %v1594 = vpop.f32.mrb[0].mxu0
    %v1595 = vpop.f32.mrb[0].mxu0
    %1596 = vdwg.mxu0
    %1597 = vrot.lane.b32.xlu0 %v1204, 48
    %v1598 = vpop.permute.xlu0 %1597
    %v1600 = vsel %vm430, %v1548, 0
    %v1603 = vsel %vm460, %v1598, 0
    %1605 = vmatprep.subr.bf16.mxu0 0
    %1606 = vmatpush1.bf16.msra.mxu0 %v1603
    %1607 = vmatprep.subr.bf16.mxu0 0
    %1608 = vmatpush1.bf16.msra.mxu0 0
    %1609 = vmatprep.subr.bf16.mxu0 0
    %1610 = vmatpush1.bf16.msra.mxu0 0
    %1611 = vmatprep.subr.bf16.mxu0 0
    %1612 = vmatpush1.bf16.msra.mxu0 0
    %1613 = vmatprep.subr.bf16.mxu0 0
    %1614 = vmatpush1.bf16.msra.mxu0 0
    %1615 = vmatprep.subr.bf16.mxu0 0
    %1616 = vmatpush1.bf16.msra.mxu0 0
    %1617 = vmatprep.subr.bf16.mxu0 0
    %1618 = vmatpush1.bf16.msra.mxu0 0
    %1619 = vmatprep.subr.bf16.mxu0 0
    %1620 = vmatpush1.bf16.msra.mxu0 0
    %1621 = vmatprep.subr.bf16.mxu0 0
    %1622 = vmatpush1.bf16.msra.mxu0 0
    %1623 = vmatprep.subr.bf16.mxu0 0
    %1624 = vmatpush1.bf16.msra.mxu0 0
    %1625 = vmatprep.subr.bf16.mxu0 0
    %1626 = vmatpush1.bf16.msra.mxu0 0
    %1627 = vmatprep.subr.bf16.mxu0 0
    %1628 = vmatpush1.bf16.msra.mxu0 0
    %1629 = vmatprep.subr.bf16.mxu0 0
    %1630 = vmatpush1.bf16.msra.mxu0 0
    %1631 = vmatprep.subr.bf16.mxu0 0
    %1632 = vmatpush1.bf16.msra.mxu0 0
    %1633 = vmatprep.subr.bf16.mxu0 0
    %1634 = vmatpush1.bf16.msra.mxu0 0
    %1635 = vmatprep.subr.bf16.mxu0 0
    %1636 = vmatpush1.bf16.msra.mxu0 0
    %1637 = vmatprep.mubr.bf16.mxu0 0
    %1638 = vmatmul.mubr.bf16.gmra.mrb[0].mxu0 %v1600
    %v1639 = vpop.f32.mrb[0].mxu0
    %v1640 = vadd.f32 0.0, %v1639
    %v1641 = vpop.f32.mrb[0].mxu0
    %v1642 = vpop.f32.mrb[0].mxu0
    %v1643 = vpop.f32.mrb[0].mxu0
    %1644 = vdwg.mxu0
    %v1645 = vpack.c.bf16 %v1592, %v1592
    %v1646 = vpack.c.bf16 %v1640, %v1640
    %v1649 = vunpack.c.l.b16 %v1645
    %v1650 = vunpack.c.l.b16 %v1646
    %v1651 = vpack.c.b16 %v1650, %v1649
    %1652 = vrot.lane.b32.xlu0 %v1156, 32
    %v1653 = vpop.permute.xlu0 %1652
    %v1656 = vsel %vm334, %v1651, 0
    %1658 = vmatprep.subr.bf16.mxu0 0
    %1659 = vmatpush1.bf16.msra.mxu0 %v1653
    %1660 = vmatprep.subr.bf16.mxu0 0
    %1661 = vmatpush1.bf16.msra.mxu0 0
    %1662 = vmatprep.subr.bf16.mxu0 0
    %1663 = vmatpush1.bf16.msra.mxu0 0
    %1664 = vmatprep.subr.bf16.mxu0 0
    %1665 = vmatpush1.bf16.msra.mxu0 0
    %1666 = vmatprep.subr.bf16.mxu0 0
    %1667 = vmatpush1.bf16.msra.mxu0 0
    %1668 = vmatprep.subr.bf16.mxu0 0
    %1669 = vmatpush1.bf16.msra.mxu0 0
    %1670 = vmatprep.subr.bf16.mxu0 0
    %1671 = vmatpush1.bf16.msra.mxu0 0
    %1672 = vmatprep.subr.bf16.mxu0 0
    %1673 = vmatpush1.bf16.msra.mxu0 0
    %1674 = vmatprep.subr.bf16.mxu0 0
    %1675 = vmatpush1.bf16.msra.mxu0 0
    %1676 = vmatprep.subr.bf16.mxu0 0
    %1677 = vmatpush1.bf16.msra.mxu0 0
    %1678 = vmatprep.subr.bf16.mxu0 0
    %1679 = vmatpush1.bf16.msra.mxu0 0
    %1680 = vmatprep.subr.bf16.mxu0 0
    %1681 = vmatpush1.bf16.msra.mxu0 0
    %1682 = vmatprep.subr.bf16.mxu0 0
    %1683 = vmatpush1.bf16.msra.mxu0 0
    %1684 = vmatprep.subr.bf16.mxu0 0
    %1685 = vmatpush1.bf16.msra.mxu0 0
    %1686 = vmatprep.subr.bf16.mxu0 0
    %1687 = vmatpush1.bf16.msra.mxu0 0
    %1688 = vmatprep.subr.bf16.mxu0 0
    %1689 = vmatpush1.bf16.msra.mxu0 0
    %1690 = vmatprep.mubr.bf16.mxu0 0
    %1691 = vmatmul.mubr.bf16.gmra.mrb[0].mxu0 %v1656
    %v1692 = vpop.f32.mrb[0].mxu0
    %v1693 = vadd.f32 0.0, %v1692
    %v1694 = vpop.f32.mrb[0].mxu0
    %v1695 = vpop.f32.mrb[0].mxu0
    %v1696 = vadd.f32 0.0, %v1695
    %v1697 = vpop.f32.mrb[0].mxu0
    %1698 = vdwg.mxu0
    %v1701 = vunpack.c.l.b16 %v1423
    %v1702 = vunpack.c.l.b16 %v1424
    %v1703 = vpack.c.b16 %v1702, %v1701
    %1704 = vrot.lane.b32.xlu0 %v1155, 32
    %v1705 = vpop.permute.xlu0 %1704
    %v1708 = vsel %vm334, %v1703, 0
    %1710 = vmatprep.subr.bf16.mxu0 0
    %1711 = vmatpush1.bf16.msra.mxu0 %v1705
    %1712 = vmatprep.subr.bf16.mxu0 0
    %1713 = vmatpush1.bf16.msra.mxu0 0
    %1714 = vmatprep.subr.bf16.mxu0 0
    %1715 = vmatpush1.bf16.msra.mxu0 0
    %1716 = vmatprep.subr.bf16.mxu0 0
    %1717 = vmatpush1.bf16.msra.mxu0 0
    %1718 = vmatprep.subr.bf16.mxu0 0
    %1719 = vmatpush1.bf16.msra.mxu0 0
    %1720 = vmatprep.subr.bf16.mxu0 0
    %1721 = vmatpush1.bf16.msra.mxu0 0
    %1722 = vmatprep.subr.bf16.mxu0 0
    %1723 = vmatpush1.bf16.msra.mxu0 0
    %1724 = vmatprep.subr.bf16.mxu0 0
    %1725 = vmatpush1.bf16.msra.mxu0 0
    %1726 = vmatprep.subr.bf16.mxu0 0
    %1727 = vmatpush1.bf16.msra.mxu0 0
    %1728 = vmatprep.subr.bf16.mxu0 0
    %1729 = vmatpush1.bf16.msra.mxu0 0
    %1730 = vmatprep.subr.bf16.mxu0 0
    %1731 = vmatpush1.bf16.msra.mxu0 0
    %1732 = vmatprep.subr.bf16.mxu0 0
    %1733 = vmatpush1.bf16.msra.mxu0 0
    %1734 = vmatprep.subr.bf16.mxu0 0
    %1735 = vmatpush1.bf16.msra.mxu0 0
    %1736 = vmatprep.subr.bf16.mxu0 0
    %1737 = vmatpush1.bf16.msra.mxu0 0
    %1738 = vmatprep.subr.bf16.mxu0 0
    %1739 = vmatpush1.bf16.msra.mxu0 0
    %1740 = vmatprep.subr.bf16.mxu0 0
    %1741 = vmatpush1.bf16.msra.mxu0 0
    %1742 = vmatprep.mubr.bf16.mxu0 0
    %1743 = vmatmul.mubr.bf16.gmra.mrb[0].mxu0 %v1708
    %v1744 = vpop.f32.mrb[0].mxu0
    %v1745 = vadd.f32 %v1693, %v1744
    %v1746 = vpop.f32.mrb[0].mxu0
    %v1747 = vpop.f32.mrb[0].mxu0
    %v1748 = vadd.f32 %v1696, %v1747
    %v1749 = vpop.f32.mrb[0].mxu0
    %1750 = vdwg.mxu0
    %v1751 = vlaneseq
    %v1752 = vshrl.u32 %v1751, 7
    %v1753 = vsub.s32 3, %v1752
    %v1754 = vrot.slane %v48, %v1753
    %v1755 = vadd.f32 %v1745, %v1754
    %v1756 = vadd.f32 %v1748, %v1754
    %v1757 = vadd.f32 %v1129, %v1755
    %v1758 = vadd.f32 %v1130, %v1756
    %v1759 = vsel %vm182, %v1757, 0.0
    %1760 = vadd.xlane.f32.xlu0 %v1759
    %v1761 = vpop.xlane.xlu0 %1760
    %v1762 = vsel %vm182, %v1758, 0.0
    %1763 = vadd.xlane.f32.xlu0 %v1762
    %v1764 = vpop.xlane.xlu0 %1763
    %v1765 = vmul.f32 %v1761, %v189
    %v1766 = vmul.f32 %v1764, %v189
    %v1767 = vsub.f32 %v1757, %v1765
    %v1768 = vsub.f32 %v1758, %v1766
    %v1769 = vmul.f32 %v1767, %v1767
    %v1770 = vmul.f32 %v1768, %v1768
    %v1771 = vsel %vm182, %v1769, 0.0
    %1772 = vadd.xlane.f32.xlu0 %v1771
    %v1773 = vpop.xlane.xlu0 %1772
    %v1774 = vsel %vm182, %v1770, 0.0
    %1775 = vadd.xlane.f32.xlu0 %v1774
    %v1776 = vpop.xlane.xlu0 %1775
    %v1777 = vmul.f32 %v1773, %v189
    %v1778 = vmul.f32 %v1776, %v189
    %v1779 = vadd.f32 %v1777, 1e-12
    %v1780 = vadd.f32 %v1778, 1e-12
    %v1781 = vrsqrt.pop %v1779
    %v1782 = vrsqrt.pop %v1780
    %v1783 = vmul.f32 %v1767, %v1781
    %v1784 = vmul.f32 %v1768, %v1782
    %v1785 = vlaneseq
    %v1786 = vshrl.u32 %v1785, 7
    %v1787 = vsub.s32 4, %v1786
    %v1788 = vrot.slane %v48, %v1787
    %v1789 = vmul.f32 %v1783, %v1788
    %v1790 = vmul.f32 %v1784, %v1788
    %v1791 = vlaneseq
    %v1792 = vshrl.u32 %v1791, 7
    %v1793 = vsub.s32 5, %v1792
    %v1794 = vrot.slane %v48, %v1793
    %v1795 = vadd.f32 %v1789, %v1794
    %v1796 = vadd.f32 %v1790, %v1794
    %s1797 = scalar_lea.vmem [#allocation5], 32
    %v1798 = vld [vmem:[%s1797] sm:$0xf]
    %v1799 = vld [vmem:[%s1797 + $0x4] sm:$0xf]
    %v1800 = vld [vmem:[%s1797 + $0x8] sm:$0xf]
    %v1801 = vld [vmem:[%s1797 + $0xc] sm:$0xf]
    %v1802 = vld [vmem:[%s1797 + $0x10] sm:$0xf]
    %v1803 = vld [vmem:[%s1797 + $0x14] sm:$0xf]
    %v1804 = vld [vmem:[%s1797 + $0x18] sm:$0xf]
    %v1805 = vld [vmem:[%s1797 + $0x1c] sm:$0xf]
    %v1806 = vpack.c.bf16 %v1795, %v1795
    %v1807 = vpack.c.bf16 %v1796, %v1796
    %v1808 = vlaneseq
    %v1809 = vshrl.u32 %v1808, 7
    %v1810 = vsub.s32 6, %v1809
    %v1811 = vrot.slane %v48, %v1810
    %v1814 = vunpack.c.l.b16 %v1806
    %v1815 = vunpack.c.l.b16 %v1807
    %v1816 = vpack.c.b16 %v1815, %v1814
    %v1821 = vunpack.c.l.b16 %v1798
    %v1822 = vunpack.c.l.b16 %v1799
    %v1823 = vunpack.c.l.b16 %v1800
    %v1824 = vunpack.c.l.b16 %v1801
    %v1825 = vpack.c.b16 %v1822, %v1821
    %v1826 = vpack.c.b16 %v1824, %v1823
    %v1830 = vsel %vm182, %v1816, 0
    %1832 = vmatprep.subr.bf16.mxu0 0
    %1833 = vmatpush1.bf16.msra.mxu0 %v1825
    %1834 = vmatprep.subr.bf16.mxu0 0
    %1835 = vmatpush1.bf16.msra.mxu0 %v1826
    %1836 = vmatprep.subr.bf16.mxu0 0
    %1837 = vmatpush1.bf16.msra.mxu0 0
    %1838 = vmatprep.subr.bf16.mxu0 0
    %1839 = vmatpush1.bf16.msra.mxu0 0
    %1840 = vmatprep.subr.bf16.mxu0 0
    %1841 = vmatpush1.bf16.msra.mxu0 0
    %1842 = vmatprep.subr.bf16.mxu0 0
    %1843 = vmatpush1.bf16.msra.mxu0 0
    %1844 = vmatprep.subr.bf16.mxu0 0
    %1845 = vmatpush1.bf16.msra.mxu0 0
    %1846 = vmatprep.subr.bf16.mxu0 0
    %1847 = vmatpush1.bf16.msra.mxu0 0
    %1848 = vmatprep.subr.bf16.mxu0 0
    %1849 = vmatpush1.bf16.msra.mxu0 0
    %1850 = vmatprep.subr.bf16.mxu0 0
    %1851 = vmatpush1.bf16.msra.mxu0 0
    %1852 = vmatprep.subr.bf16.mxu0 0
    %1853 = vmatpush1.bf16.msra.mxu0 0
    %1854 = vmatprep.subr.bf16.mxu0 0
    %1855 = vmatpush1.bf16.msra.mxu0 0
    %1856 = vmatprep.subr.bf16.mxu0 0
    %1857 = vmatpush1.bf16.msra.mxu0 0
    %1858 = vmatprep.subr.bf16.mxu0 0
    %1859 = vmatpush1.bf16.msra.mxu0 0
    %1860 = vmatprep.subr.bf16.mxu0 0
    %1861 = vmatpush1.bf16.msra.mxu0 0
    %1862 = vmatprep.subr.bf16.mxu0 0
    %1863 = vmatpush1.bf16.msra.mxu0 0
    %1864 = vmatprep.mubr.bf16.mxu0 0
    %1865 = vmatmul.mubr.bf16.gmra.mrb[0].mxu0 %v1830
    %v1866 = vpop.f32.mrb[0].mxu0
    %v1867 = vadd.f32 %v1811, %v1866
    %v1868 = vpop.f32.mrb[0].mxu0
    %v1869 = vpop.f32.mrb[0].mxu0
    %v1870 = vadd.f32 %v1811, %v1869
    %v1871 = vpop.f32.mrb[0].mxu0
    %1872 = vdwg.mxu0
    %v1873 = vmul.f32 %v1867, %v1867
    %v1874 = vmul.f32 %v1870, %v1870
    %v1875 = vmul.f32 %v1867, %v1873
    %v1876 = vmul.f32 %v1870, %v1874
    %v1877 = vmul.f32 %v1875, 0.044715
    %v1878 = vmul.f32 %v1876, 0.044715
    %v1879 = vadd.f32 %v1867, %v1877
    %v1880 = vadd.f32 %v1870, %v1878
    %v1881 = vmul.f32 %v1879, 0.7978846
    %v1882 = vmul.f32 %v1880, 0.7978846
    %v1883 = vtanh.pop %v1881
    %v1884 = vtanh.pop %v1882
    %v1885 = vadd.f32 %v1883, 1.0
    %v1886 = vadd.f32 %v1884, 1.0
    %v1887 = vmul.f32 %v1885, 0.5
    %v1888 = vmul.f32 %v1886, 0.5
    %v1889 = vmul.f32 %v1867, %v1887
    %v1890 = vmul.f32 %v1870, %v1888
    %v1891 = vpack.c.bf16 %v1889, %v1889
    %v1892 = vpack.c.bf16 %v1890, %v1890
    %v1893 = vlaneseq
    %v1894 = vshrl.u32 %v1893, 7
    %v1895 = vsub.s32 7, %v1894
    %v1896 = vrot.slane %v48, %v1895
    %v1899 = vunpack.c.l.b16 %v1891
    %v1900 = vunpack.c.l.b16 %v1892
    %v1901 = vpack.c.b16 %v1900, %v1899
    %v1906 = vunpack.c.l.b16 %v1802
    %v1907 = vunpack.c.l.b16 %v1803
    %v1908 = vunpack.c.l.b16 %v1804
    %v1909 = vunpack.c.l.b16 %v1805
    %v1910 = vpack.c.b16 %v1907, %v1906
    %v1911 = vpack.c.b16 %v1909, %v1908
    %v1913 = vsel %vm1040, %v1901, 0
    %v1916 = vsel %vm1040, %v1910, 0
    %v1919 = vsel %vm1040, %v1911, 0
    %1921 = vmatprep.subr.bf16.mxu0 0
    %1922 = vmatpush1.bf16.xpose.msra.mxu0 %v1916
    %1923 = vmatprep.subr.bf16.mxu0 0
    %1924 = vmatpush1.bf16.xpose.msra.mxu0 %v1919
    %1925 = vmatprep.subr.bf16.mxu0 0
    %1926 = vmatpush1.bf16.xpose.msra.mxu0 0
    %1927 = vmatprep.subr.bf16.mxu0 0
    %1928 = vmatpush1.bf16.xpose.msra.mxu0 0
    %1929 = vmatprep.subr.bf16.mxu0 0
    %1930 = vmatpush1.bf16.xpose.msra.mxu0 0
    %1931 = vmatprep.subr.bf16.mxu0 0
    %1932 = vmatpush1.bf16.xpose.msra.mxu0 0
    %1933 = vmatprep.subr.bf16.mxu0 0
    %1934 = vmatpush1.bf16.xpose.msra.mxu0 0
    %1935 = vmatprep.subr.bf16.mxu0 0
    %1936 = vmatpush1.bf16.xpose.msra.mxu0 0
    %1937 = vmatprep.subr.bf16.mxu0 0
    %1938 = vmatpush1.bf16.xpose.msra.mxu0 0
    %1939 = vmatprep.subr.bf16.mxu0 0
    %1940 = vmatpush1.bf16.xpose.msra.mxu0 0
    %1941 = vmatprep.subr.bf16.mxu0 0
    %1942 = vmatpush1.bf16.xpose.msra.mxu0 0
    %1943 = vmatprep.subr.bf16.mxu0 0
    %1944 = vmatpush1.bf16.xpose.msra.mxu0 0
    %1945 = vmatprep.subr.bf16.mxu0 0
    %1946 = vmatpush1.bf16.xpose.msra.mxu0 0
    %1947 = vmatprep.subr.bf16.mxu0 0
    %1948 = vmatpush1.bf16.xpose.msra.mxu0 0
    %1949 = vmatprep.subr.bf16.mxu0 0
    %1950 = vmatpush1.bf16.xpose.msra.mxu0 0
    %1951 = vmatprep.subr.bf16.mxu0 0
    %1952 = vmatpush1.bf16.xpose.msra.mxu0 0
    %1953 = vmatprep.mubr.bf16.mxu0 0
    %1954 = vmatmul.mubr.bf16.gmra.mrb[0].mxu0 %v1913
    %v1955 = vpop.f32.mrb[0].mxu0
    %v1956 = vadd.f32 %v1896, %v1955
    %v1957 = vpop.f32.mrb[0].mxu0
    %v1958 = vpop.f32.mrb[0].mxu0
    %v1959 = vadd.f32 %v1896, %v1958
    %v1960 = vpop.f32.mrb[0].mxu0
    %1961 = vdwg.mxu0
    %v1962 = vadd.f32 %v1795, %v1956
    %v1963 = vadd.f32 %v1796, %v1959
    %v1964 = vsel %vm182, %v1962, 0.0
    %1965 = vadd.xlane.f32.xlu0 %v1964
    %v1966 = vpop.xlane.xlu0 %1965
    %v1967 = vsel %vm182, %v1963, 0.0
    %1968 = vadd.xlane.f32.xlu0 %v1967
    %v1969 = vpop.xlane.xlu0 %1968
    %v1970 = vmul.f32 %v1966, %v189
    %v1971 = vmul.f32 %v1969, %v189
    %v1972 = vsub.f32 %v1962, %v1970
    %v1973 = vsub.f32 %v1963, %v1971
    %v1974 = vmul.f32 %v1972, %v1972
    %v1975 = vmul.f32 %v1973, %v1973
    %v1976 = vsel %vm182, %v1974, 0.0
    %1977 = vadd.xlane.f32.xlu0 %v1976
    %v1978 = vpop.xlane.xlu0 %1977
    %v1979 = vsel %vm182, %v1975, 0.0
    %1980 = vadd.xlane.f32.xlu0 %v1979
    %v1981 = vpop.xlane.xlu0 %1980
    %v1982 = vmul.f32 %v1978, %v189
    %v1983 = vmul.f32 %v1981, %v189
    %v1984 = vadd.f32 %v1982, 1e-12
    %v1985 = vadd.f32 %v1983, 1e-12
    %v1986 = vrsqrt.pop %v1984
    %v1987 = vrsqrt.pop %v1985
    %v1988 = vmul.f32 %v1972, %v1986
    %v1989 = vmul.f32 %v1973, %v1987
    %v1990 = vlaneseq
    %v1991 = vshrl.u32 %v1990, 7
    %v1992 = vsub.s32 0, %v1991
    %v1993 = vrot.slane %v49, %v1992
    %v1994 = vmul.f32 %v1988, %v1993
    %v1995 = vmul.f32 %v1989, %v1993
    %v1996 = vlaneseq
    %v1997 = vshrl.u32 %v1996, 7
    %v1998 = vsub.s32 1, %v1997
    %v1999 = vrot.slane %v49, %v1998
    %v2000 = vadd.f32 %v1994, %v1999
    %v2001 = vadd.f32 %v1995, %v1999
    %v2002 = vpack.c.bf16 %v2000, %v2000
    %v2003 = vpack.c.bf16 %v2001, %v2001
    %s2004 = scalar_lea.vmem [#allocation2], 48
    %v2005 = vld [vmem:[%s2004] sm:$0xf]
    %v2006 = vld [vmem:[%s2004 + $0x4] sm:$0xf]
    %v2007 = vld [vmem:[%s2004 + $0x8] sm:$0xf]
    %v2008 = vld [vmem:[%s2004 + $0xc] sm:$0xf]
    %v2011 = vunpack.c.l.b16 %v2002
    %v2012 = vunpack.c.l.b16 %v2003
    %v2013 = vrot.slane %v2012, 7
    %vm2014 = vcmask 1041409
    %v2015 = vsel %vm2014, %v2013, %v2011
    %v2016 = vpack.c.b16 %v2015, %v2015
    %v2021 = vunpack.c.l.b16 %v2005
    %v2022 = vunpack.c.l.b16 %v2006
    %v2023 = vunpack.c.l.b16 %v2007
    %v2024 = vunpack.c.l.b16 %v2008
    %v2025 = vpack.c.b16 %v2022, %v2021
    %v2026 = vpack.c.b16 %v2024, %v2023
    %v2030 = vrot.slane %v49, 2
    %v2031 = vrot.slane %v49, 1
    %v2032 = vsel %vm2014, %v2031, %v2030
    %v2035 = vsel %vm182, %v2016, 0
    %2037 = vmatprep.subr.bf16.mxu0 0
    %2038 = vmatpush1.bf16.msra.mxu0 %v2025
    %2039 = vmatprep.subr.bf16.mxu0 0
    %2040 = vmatpush1.bf16.msra.mxu0 %v2026
    %2041 = vmatprep.subr.bf16.mxu0 0
    %2042 = vmatpush1.bf16.msra.mxu0 0
    %2043 = vmatprep.subr.bf16.mxu0 0
    %2044 = vmatpush1.bf16.msra.mxu0 0
    %2045 = vmatprep.subr.bf16.mxu0 0
    %2046 = vmatpush1.bf16.msra.mxu0 0
    %2047 = vmatprep.subr.bf16.mxu0 0
    %2048 = vmatpush1.bf16.msra.mxu0 0
    %2049 = vmatprep.subr.bf16.mxu0 0
    %2050 = vmatpush1.bf16.msra.mxu0 0
    %2051 = vmatprep.subr.bf16.mxu0 0
    %2052 = vmatpush1.bf16.msra.mxu0 0
    %2053 = vmatprep.subr.bf16.mxu0 0
    %2054 = vmatpush1.bf16.msra.mxu0 0
    %2055 = vmatprep.subr.bf16.mxu0 0
    %2056 = vmatpush1.bf16.msra.mxu0 0
    %2057 = vmatprep.subr.bf16.mxu0 0
    %2058 = vmatpush1.bf16.msra.mxu0 0
    %2059 = vmatprep.subr.bf16.mxu0 0
    %2060 = vmatpush1.bf16.msra.mxu0 0
    %2061 = vmatprep.subr.bf16.mxu0 0
    %2062 = vmatpush1.bf16.msra.mxu0 0
    %2063 = vmatprep.subr.bf16.mxu0 0
    %2064 = vmatpush1.bf16.msra.mxu0 0
    %2065 = vmatprep.subr.bf16.mxu0 0
    %2066 = vmatpush1.bf16.msra.mxu0 0
    %2067 = vmatprep.subr.bf16.mxu0 0
    %2068 = vmatpush1.bf16.msra.mxu0 0
    %2069 = vmatprep.mubr.bf16.mxu0 0
    %2070 = vmatmul.mubr.bf16.gmra.mrb[0].mxu0 %v2035
    %v2071 = vpop.f32.mrb[0].mxu0
    %v2072 = vadd.f32 %v2032, %v2071
    %v2073 = vpop.f32.mrb[0].mxu0
    %v2074 = vpop.f32.mrb[0].mxu0
    %v2075 = vpop.f32.mrb[0].mxu0
    %2076 = vdwg.mxu0
    %v2079 = vunpack.c.l.s4 1966171168
    %v2080 = vunpack.c.0.s8 %v2079
    %v2081 = vlaneseq
    %v2082 = vshrl.u32 %v2081, 7
    %v2083 = vsub.s32 %v2080, %v2082
    %v2084 = vrot.slane %v2072, %v2083
    %v2085 = vcombine.high %v2084, %v2084
    %v2087 = vunpack.c.l.s4 1966171168
    %v2088 = vunpack.c.0.s8 %v2087
    %v2089 = vlaneseq
    %v2090 = vshrl.u32 %v2089, 7
    %v2091 = vsub.s32 %v2088, %v2090
    %v2092 = vrot.slane %v2084, %v2091
    %v2094 = vunpack.c.l.s4 1966171168
    %v2095 = vunpack.c.0.s8 %v2094
    %v2096 = vlaneseq
    %v2097 = vshrl.u32 %v2096, 7
    %v2098 = vsub.s32 %v2095, %v2097
    %v2099 = vrot.slane %v2085, %v2098
    %v2102 = vtanh.pop %v2092
    %v2103 = vtanh.pop %v2099
    %v2104 = vpack.c.bf16 %v2102, %v2102
    %v2105 = vpack.c.bf16 %v2103, %v2103
    %s2106 = scalar_lea.vmem [#allocation2], 64
    %v2107 = vld [vmem:[%s2106] sm:$0xf]
    %v2108 = vld [vmem:[%s2106 + $0x4] sm:$0xf]
    %v2109 = vld [vmem:[%s2106 + $0x8] sm:$0xf]
    %v2110 = vld [vmem:[%s2106 + $0xc] sm:$0xf]
    %v2113 = vunpack.c.l.b16 %v2104
    %v2114 = vunpack.c.l.b16 %v2105
    %v2115 = vrot.slane %v2114, 7
    %v2116 = vsel %vm2014, %v2115, %v2113
    %v2117 = vpack.c.b16 %v2116, %v2116
    %v2122 = vunpack.c.l.b16 %v2107
    %v2123 = vunpack.c.l.b16 %v2108
    %v2124 = vunpack.c.l.b16 %v2109
    %v2125 = vunpack.c.l.b16 %v2110
    %v2126 = vpack.c.b16 %v2123, %v2122
    %v2127 = vpack.c.b16 %v2125, %v2124
    %v2130 = vrot.slane %v49, 3
    %v2131 = vsel %vm2014, %v2030, %v2130
    %v2134 = vsel %vm182, %v2117, 0
    %2136 = vmatprep.subr.bf16.mxu0 0
    %2137 = vmatpush1.bf16.msra.mxu0 %v2126
    %2138 = vmatprep.subr.bf16.mxu0 0
    %2139 = vmatpush1.bf16.msra.mxu0 %v2127
    %2140 = vmatprep.subr.bf16.mxu0 0
    %2141 = vmatpush1.bf16.msra.mxu0 0
    %2142 = vmatprep.subr.bf16.mxu0 0
    %2143 = vmatpush1.bf16.msra.mxu0 0
    %2144 = vmatprep.subr.bf16.mxu0 0
    %2145 = vmatpush1.bf16.msra.mxu0 0
    %2146 = vmatprep.subr.bf16.mxu0 0
    %2147 = vmatpush1.bf16.msra.mxu0 0
    %2148 = vmatprep.subr.bf16.mxu0 0
    %2149 = vmatpush1.bf16.msra.mxu0 0
    %2150 = vmatprep.subr.bf16.mxu0 0
    %2151 = vmatpush1.bf16.msra.mxu0 0
    %2152 = vmatprep.subr.bf16.mxu0 0
    %2153 = vmatpush1.bf16.msra.mxu0 0
    %2154 = vmatprep.subr.bf16.mxu0 0
    %2155 = vmatpush1.bf16.msra.mxu0 0
    %2156 = vmatprep.subr.bf16.mxu0 0
    %2157 = vmatpush1.bf16.msra.mxu0 0
    %2158 = vmatprep.subr.bf16.mxu0 0
    %2159 = vmatpush1.bf16.msra.mxu0 0
    %2160 = vmatprep.subr.bf16.mxu0 0
    %2161 = vmatpush1.bf16.msra.mxu0 0
    %2162 = vmatprep.subr.bf16.mxu0 0
    %2163 = vmatpush1.bf16.msra.mxu0 0
    %2164 = vmatprep.subr.bf16.mxu0 0
    %2165 = vmatpush1.bf16.msra.mxu0 0
    %2166 = vmatprep.subr.bf16.mxu0 0
    %2167 = vmatpush1.bf16.msra.mxu0 0
    %2168 = vmatprep.mubr.bf16.mxu0 0
    %2169 = vmatmul.mubr.bf16.gmra.mrb[0].mxu0 %v2134
    %v2170 = vpop.f32.mrb[0].mxu0
    %v2171 = vadd.f32 %v2131, %v2170
    %v2172 = vpop.f32.mrb[0].mxu0
    %v2173 = vpop.f32.mrb[0].mxu0
    %v2174 = vpop.f32.mrb[0].mxu0
    %2175 = vdwg.mxu0
    %2176 = vst [vmem:[#allocation7] sm:$0x3] %v2171
    // Predicated region
    $region26: #{bert_classifier_forward.1} parent=1 // pred_check
      _
    $region27: #{bert_classifier_forward.1} parent=1 // pred_check_branch
      %2178 = sbr.rel (0) target = $region29
    $region28: #{bert_classifier_forward.1} parent=1 // pred_region
      %s2180 = ssub.s32 32, 32
      %2181 = vsyncadd [#allocation4], %s2180
      %s2183 = sshll.u32 [#allocation7], 4
      %s2184 = int_to_ptr.vmem [resolvable:$true] %s2183
      %2186 = dma.vmem_to_hbm [thread:$0]  %s2184, 32, %s4, [#allocation4]
    $region29: #{bert_classifier_forward.1} parent=1 // pred_fallthru
      _
    // Predicated region
    $region30: #{bert_classifier_forward.1} parent=1 // pred_check
      _
    $region31: #{bert_classifier_forward.1} parent=1 // pred_check_branch
      %2188 = sbr.rel (0) target = $region33
    $region32: #{bert_classifier_forward.1} parent=1 // pred_region
      %2189 = dma.done [#allocation4], 32
    $region33: #{bert_classifier_forward.1} parent=1 // pred_fallthru
      _
    %2190 = vsyncpa [#allocation3], 1
    %2191 = vsyncpa [#allocation6], 1
    %2192 = vsyncpa [#allocation4], 1

</llo_original>
